<compile_context>
chip_gen: v7x
topology: tpu7x:2x2x1
jax: 0.10.0
libtpu: 0.0.40
codegen_flags: <defaults>
</compile_context>

<pallas_src>
import jax
import jax.numpy as jnp
from jax.experimental import pallas as pl
from jax.experimental.pallas import tpu as pltpu


# ---------------------------------------------------------------------------
# In-kernel GELU (tanh form: EUP tanh + few VPU ops, lane-dense tiles)
# ---------------------------------------------------------------------------

_GELU_TANH_C = 0.7978845608028654   # sqrt(2/pi)


def _gelu_tanh(x):
    # 0.5*x*(1 + tanh(sqrt(2/pi)*(x + 0.044715*x^3)))
    return 0.5 * x * (1.0 + jnp.tanh(_GELU_TANH_C * x * (1.0 + 0.044715 * x * x)))


# ---------------------------------------------------------------------------
# The single Pallas kernel: column-tiled (channel-major) matmul + shift + GELU
# ---------------------------------------------------------------------------

def _matmul_bn_gelu_kernel(x_ref, w_ref, shift_ref, o_ref):
    # (Cout, bn) = (Cout, K) @ (K, bn); lanes run along the N tile, so the
    # GELU epilogue and the store are lane-dense (bn is a multiple of 128).
    y = jnp.dot(w_ref[...], x_ref[...], preferred_element_type=jnp.float32)
    o_ref[...] = _gelu_tanh(y + shift_ref[...]).astype(o_ref.dtype)


def _vmem_cap_bytes():
    try:
        return int(pltpu.get_tpu_info().vmem_capacity_bytes)
    except Exception:
        return 64 * 1024 * 1024          # conservative (v7x per-TC VMEM)


def _vmem_budget_bytes():
    # Stay under the smallest scoped-VMEM default (16 MiB on v5e) and leave
    # headroom for the pipeline's own bookkeeping.
    return min(12 * 1024 * 1024, _vmem_cap_bytes() // 4)


def _pick_block_cols(n, k, cout, budget_bytes):
    """Largest column tile (multiple of 128) such that the double-buffered
    (K, bn) / (Cout, bn) tiles plus the (double-buffered) pinned weight/shift
    fit `budget_bytes`, capped so the grid has >= ~8 steps (megacore depth on
    v7x, prefetch/writeback overlap on v5e/v6e)."""
    fixed = 2 * (k * cout + cout) * 4        # pinned weight + shift (x2 bufs)
    per_col = 2 * (k + cout) * 4             # x tile + out tile (x2 bufs)
    avail = budget_bytes - fixed
    if avail < per_col * 128:
        raise ValueError(
            f"pinned weight block ({fixed} B double-buffered) leaves no room "
            f"for a 128-column tile under the {budget_bytes} B VMEM budget")
    cols = avail // per_col
    n_up = pl.cdiv(n, 128) * 128
    cols = min(cols, max(128, (n_up // 8 // 128) * 128), 2048, n_up)
    return max(128, (cols // 128) * 128)


def matmul_bn_gelu(x_km, w, shift):
    """out (Cout, N) = gelu(w (Cout, K) @ x_km (K, N) + shift (Cout, 1))."""
    k, n = x_km.shape
    cout = w.shape[0]
    budget = _vmem_budget_bytes()
    bn = _pick_block_cols(n, k, cout, budget)
    est = 2 * 4 * (k * cout + cout + (k + cout) * bn) + (1 << 20)
    vmem_limit = int(min(_vmem_cap_bytes(), max(16 * 1024 * 1024, 2 * est)))
    grid = (pl.cdiv(n, bn),)
    return pl.pallas_call(
        _matmul_bn_gelu_kernel,
        out_shape=jax.ShapeDtypeStruct((cout, n), jnp.float32),
        grid_spec=pltpu.PrefetchScalarGridSpec(
            num_scalar_prefetch=0,
            grid=grid,
            in_specs=[
                pl.BlockSpec((k, bn), lambda i: (0, i)),     # column-tiled input
                pl.BlockSpec((cout, k), lambda i: (0, 0)),   # pinned weight
                pl.BlockSpec((cout, 1), lambda i: (0, 0)),   # pinned shift
            ],
            out_specs=pl.BlockSpec((cout, bn), lambda i: (0, i)),
        ),
        compiler_params=pltpu.CompilerParams(
            dimension_semantics=("parallel",),
            vmem_limit_bytes=vmem_limit),
    )(x_km, w, shift)


# Pure-JAX reference of the same fused op (exact erf GELU, HIGHEST precision).
def _ref_matmul_bn_gelu(x_km, w, shift):
    y = jnp.dot(w, x_km, precision=jax.lax.Precision.HIGHEST) + shift
    return jax.nn.gelu(y, approximate=False)


# ---------------------------------------------------------------------------
# Glue (layout plumbing in plain JAX, all channel-major)
# ---------------------------------------------------------------------------

def _embed_with_border_cm(y, border):
    """y: (C, B, T, H, W) interior output of a padding=1 1x1x1 conv+BN+GELU;
    the border ring of the padded output is the input-independent per-channel
    constant gelu(shift).  Implemented as a fusable pad + select."""
    c = y.shape[0]
    yp = jnp.pad(y, ((0, 0), (0, 0), (1, 1), (1, 1), (1, 1)))
    _, _, tp, hp, wp = yp.shape

    def edge(m):
        i = jnp.arange(m)
        return (i == 0) | (i == m - 1)

    mask = (edge(tp)[:, None, None] | edge(hp)[None, :, None]
            | edge(wp)[None, None, :])
    return jnp.where(mask[None, None], border.reshape(c, 1, 1, 1, 1), yp)


def _extract_3x3x3_patches_cm(yp):
    """yp: (C, B, T+2, H+2, W+2) -> (27*C, N) patch slab, K ordered tap-major,
    channel-minor (k = ((kt*3+kh)*3+kw)*C + c), matching weights reshaped from
    (Cout, C, 3, 3, 3) via transpose to (Cout, kt, kh, kw, C)."""
    c, b, tp, hp, wp = yp.shape
    t, h, w = tp - 2, hp - 2, wp - 2
    slabs = [yp[:, :, kt:kt + t, kh:kh + h, kw:kw + w].reshape(c, -1)
             for kt in range(3) for kh in range(3) for kw in range(3)]
    return jnp.concatenate(slabs, axis=0)


def _maxpool3x3x3_same_cm(x):
    """x: (C, B, T, H, W); zero-padded, stride-1, 3x3x3 max pool (separable)."""
    xp = jnp.pad(x, ((0, 0), (0, 0), (1, 1), (1, 1), (1, 1)))
    m = jnp.maximum(jnp.maximum(xp[..., :-2], xp[..., 1:-1]), xp[..., 2:])
    m = jnp.maximum(jnp.maximum(m[..., :-2, :], m[..., 1:-1, :]), m[..., 2:, :])
    m = jnp.maximum(jnp.maximum(m[:, :, :-2], m[:, :, 1:-1]), m[:, :, 2:])
    return m


def make_inception_fn(out_channels, mm_fn):
    c0, c1, c2, c3, c4, c5 = out_channels

    def fwd(x, kp):
        b, cin, t, h, w = x.shape
        n = b * t * h * w
        # NCDHW -> channel-major (Cin, N); only leading axes move.
        x_cm = jnp.transpose(x, (1, 0, 2, 3, 4)).reshape(cin, n)

        # --- call 1: b0 / b1a / b2a 1x1x1 convs fused into ONE matmul ---
        y_1x1 = mm_fn(x_cm, kp['w_1x1'], kp['h_1x1'])        # (c0+c1+c3, N)
        b0 = y_1x1[:c0]

        # b1a/b2a had padding=1: the border output is input-independent.
        border = jax.nn.gelu(kp['h_1x1'][c0:, 0], approximate=False)
        y12a = y_1x1[c0:].reshape(c1 + c3, b, t, h, w)
        y12a_p = _embed_with_border_cm(y12a, border)

        # --- call 2: b1b + b2b 3x3x3 convs as ONE block-diagonal matmul ---
        patches = _extract_3x3x3_patches_cm(y12a_p)          # (27*(c1+c3), N)
        y_3x3 = mm_fn(patches, kp['w_3x3'], kp['h_3x3'])     # [b1; b2], (c2+c4, N)

        # --- call 3: zero-padded 3x3x3 max-pool -> 1x1x1 conv ---
        pooled = _maxpool3x3x3_same_cm(
            x_cm.reshape(cin, b, t, h, w)).reshape(cin, n)
        b3 = mm_fn(pooled, kp['w_pool'], kp['h_pool'])       # (c5, N)

        out = jnp.concatenate([b0, y_3x3, b3], axis=0)       # channel concat
        out = out.reshape(-1, b, t, h, w)
        return jnp.transpose(out, (1, 0, 2, 3, 4))           # back to NCDHW

    return fwd


# ---------------------------------------------------------------------------
# Deterministic params: torch-layout raw params, then BN-folded kernel layout
# ---------------------------------------------------------------------------

def make_raw_params(key, in_channels, out_channels):
    c0, c1, c2, c3, c4, c5 = out_channels
    ks = jax.random.split(key, 12)

    def conv_w(k, cout, cin, ksz):
        fan_in = cin * ksz ** 3
        shape = (cout, cin) if ksz == 1 else (cout, cin, 3, 3, 3)
        return jax.random.normal(k, shape, jnp.float32) * (fan_in ** -0.5)

    def bn(k, c):
        k1, k2, k3, k4 = jax.random.split(k, 4)
        return dict(
            gamma=1.0 + 0.1 * jax.random.normal(k1, (c,), jnp.float32),
            beta=0.1 * jax.random.normal(k2, (c,), jnp.float32),
            mean=0.1 * jax.random.normal(k3, (c,), jnp.float32),
            var=jax.random.uniform(k4, (c,), jnp.float32, 0.5, 1.5))

    return dict(
        w0=conv_w(ks[0], c0, in_channels, 1), bn0=bn(ks[1], c0),
        w1a=conv_w(ks[2], c1, in_channels, 1), bn1a=bn(ks[3], c1),
        w1b=conv_w(ks[4], c2, c1, 3), bn1b=bn(ks[5], c2),
        w2a=conv_w(ks[6], c3, in_channels, 1), bn2a=bn(ks[7], c3),
        w2b=conv_w(ks[8], c4, c3, 3), bn2b=bn(ks[9], c4),
        w3b=conv_w(ks[10], c5, in_channels, 1), bn3b=bn(ks[11], c5))


def prepare_params(raw, out_channels):
    """Fold eval-mode BatchNorm3d(eps=1e-3) into the conv weights (scale) and a
    per-channel shift, and pack the branch weights into the kernel layout."""
    c0, c1, c2, c3, c4, c5 = out_channels

    def fold(bn):
        scale = bn['gamma'] * jax.lax.rsqrt(bn['var'] + 1e-3)
        shift = bn['beta'] - bn['mean'] * scale
        return scale, shift

    def fold1(w, bn):                      # (Cout, Cin) 1x1x1 conv
        s, hh = fold(bn)
        return w * s[:, None], hh

    def fold3(w, bn):                      # (Cout, Cin, 3,3,3) -> (Cout, 27*Cin)
        s, hh = fold(bn)
        wk = jnp.transpose(w, (0, 2, 3, 4, 1)).reshape(w.shape[0], -1)
        return wk * s[:, None], hh

    w0, h0 = fold1(raw['w0'], raw['bn0'])
    w1a, h1a = fold1(raw['w1a'], raw['bn1a'])
    w2a, h2a = fold1(raw['w2a'], raw['bn2a'])
    w3b, h3b = fold1(raw['w3b'], raw['bn3b'])
    w1b, h1b = fold3(raw['w1b'], raw['bn1b'])
    w2b, h2b = fold3(raw['w2b'], raw['bn2b'])

    # Call 1: the three 1x1x1 convs share the input -> channel-concat weights.
    w_1x1 = jnp.concatenate([w0, w1a, w2a], axis=0)
    h_1x1 = jnp.concatenate([h0, h1a, h2a], axis=0)[:, None]

    # Call 2: block-diagonal weights over the channel-concatenated [y1a; y2a]
    # activation (K ordered tap-major over c1+c3 channels).  Note: the zero
    # blocks waste MXU flops at large channel counts; grid-stacking the two
    # convs would preserve flops at the cost of duplicated patch glue.
    wm = jnp.zeros((c2 + c4, 27, c1 + c3), jnp.float32)
    wm = wm.at[:c2, :, :c1].set(w1b.reshape(c2, 27, c1))
    wm = wm.at[c2:, :, c1:].set(w2b.reshape(c4, 27, c3))
    w_3x3 = wm.reshape(c2 + c4, 27 * (c1 + c3))
    h_3x3 = jnp.concatenate([h1b, h2b], axis=0)[:, None]

    return dict(w_1x1=w_1x1, h_1x1=h_1x1,
                w_3x3=w_3x3, h_3x3=h_3x3,
                w_pool=w3b, h_pool=h3b[:, None])


def inception_pallas(out_channels):
    return make_inception_fn(out_channels, matmul_bn_gelu)


def inception_reference(out_channels):
    return make_inception_fn(out_channels, _ref_matmul_bn_gelu)


if __name__ == "__main__":
    key = jax.random.PRNGKey(0)
    k_x, k_p = jax.random.split(key)

    B, Cin, T, H, W = 2, 8, 4, 16, 16            # torch NCDHW input; N = 2048
    out_channels = (8, 8, 16, 8, 16, 8)          # concat channels 8+16+16+8=48

    x = jax.random.normal(k_x, (B, Cin, T, H, W), jnp.float32)
    raw = make_raw_params(k_p, Cin, out_channels)
    kp = prepare_params(raw, out_channels)

    fwd = jax.jit(inception_pallas(out_channels))
    out = jax.block_until_ready(fwd(x, kp))

    c_total = out_channels[0] + out_channels[2] + out_channels[4] + out_channels[5]
    assert out.shape == (B, c_total, T, H, W), out.shape
    assert out.dtype == jnp.float32, out.dtype

    ref_fn = jax.jit(inception_reference(out_channels))
    ref = jax.block_until_ready(ref_fn(x, kp))
    max_err = float(jnp.max(jnp.abs(out - ref)))
    assert max_err < 1e-3, f"max abs err {max_err}"

    print("KERNEL_OK")
</pallas_src>

<mosaic_0001>
module attributes {stable_mosaic.version = 11 : i64} {
  func.func @_matmul_bn_gelu_kernel(%arg0: i32, %arg1: memref<8x256xf32, #tpu.memory_space<vmem>>, %arg2: memref<24x8xf32, #tpu.memory_space<vmem>>, %arg3: memref<24x1xf32, #tpu.memory_space<vmem>>, %arg4: memref<24x256xf32, #tpu.memory_space<vmem>>) attributes {dimension_semantics = [#tpu.dimension_semantics<parallel>], iteration_bounds = array<i64: 8>, scalar_prefetch = 0 : i64, scratch_operands = 0 : i64, tpu.core_type = #tpu.core_type<tc>, window_params = [{transform_indices = @transform_0, window_bounds = array<i64: 8, 256>}, {pipeline_mode = #tpu.pipeline_mode<synchronous>, transform_indices = @transform_1, window_bounds = array<i64: 24, 8>}, {pipeline_mode = #tpu.pipeline_mode<synchronous>, transform_indices = @transform_2, window_bounds = array<i64: 24, 1>}, {transform_indices = @transform_3, window_bounds = array<i64: 24, 256>}]} {
    %c0 = arith.constant 0 : index
    %c0_0 = arith.constant 0 : index
    %0 = vector.load %arg2[%c0, %c0_0] : memref<24x8xf32, #tpu.memory_space<vmem>>, vector<24x8xf32>
    %c0_1 = arith.constant 0 : index
    %c0_2 = arith.constant 0 : index
    %1 = vector.load %arg1[%c0_1, %c0_2] : memref<8x256xf32, #tpu.memory_space<vmem>>, vector<8x256xf32>
    %cst = arith.constant dense<0.000000e+00> : vector<24x256xf32>
    %2 = tpu.matmul %0, %1, %cst {dimension_numbers = #tpu.dot_dimension_numbers<[1], [0], [0], [1], [0, 0, 1, 1], [], []>} : vector<24x8xf32>, vector<8x256xf32>, vector<24x256xf32> -> vector<24x256xf32>
    %c0_3 = arith.constant 0 : index
    %c0_4 = arith.constant 0 : index
    %3 = vector.load %arg3[%c0_3, %c0_4] : memref<24x1xf32, #tpu.memory_space<vmem>>, vector<24x1xf32>
    %4 = vector.broadcast %3 : vector<24x1xf32> to vector<24x256xf32>
    %5 = arith.addf %2, %4 : vector<24x256xf32>
    %cst_5 = arith.constant 5.000000e-01 : f32
    %6 = vector.broadcast %cst_5 : f32 to vector<24x256xf32>
    %7 = arith.mulf %6, %5 : vector<24x256xf32>
    %cst_6 = arith.constant 0.797884583 : f32
    %8 = vector.broadcast %cst_6 : f32 to vector<24x256xf32>
    %9 = arith.mulf %8, %5 : vector<24x256xf32>
    %cst_7 = arith.constant 4.471500e-02 : f32
    %10 = vector.broadcast %cst_7 : f32 to vector<24x256xf32>
    %11 = arith.mulf %10, %5 : vector<24x256xf32>
    %12 = arith.mulf %11, %5 : vector<24x256xf32>
    %cst_8 = arith.constant 1.000000e+00 : f32
    %13 = vector.broadcast %cst_8 : f32 to vector<24x256xf32>
    %14 = arith.addf %13, %12 : vector<24x256xf32>
    %15 = arith.mulf %9, %14 : vector<24x256xf32>
    %16 = math.tanh %15 : vector<24x256xf32>
    %cst_9 = arith.constant 1.000000e+00 : f32
    %17 = vector.broadcast %cst_9 : f32 to vector<24x256xf32>
    %18 = arith.addf %17, %16 : vector<24x256xf32>
    %19 = arith.mulf %7, %18 : vector<24x256xf32>
    %c0_10 = arith.constant 0 : index
    %c0_11 = arith.constant 0 : index
    %20 = vector.load %arg4[%c0_10, %c0_11] : memref<24x256xf32, #tpu.memory_space<vmem>>, vector<24x256xf32>
    tpu.vector_store %arg4[%c0_10, %c0_11], %19 {strides = array<i32>} : memref<24x256xf32, #tpu.memory_space<vmem>>, vector<24x256xf32>,
    return
  }
  func.func @transform_0(%arg0: i32) -> (i32, i32) {
    %c0_i32 = arith.constant 0 : i32
    %c0_i32_0 = arith.constant 0 : i32
    return %c0_i32, %arg0 : i32, i32
  }
  func.func @transform_1(%arg0: i32) -> (i32, i32) {
    %c0_i32 = arith.constant 0 : i32
    %c0_i32_0 = arith.constant 0 : i32
    %c0_i32_1 = arith.constant 0 : i32
    return %c0_i32, %c0_i32_0 : i32, i32
  }
  func.func @transform_2(%arg0: i32) -> (i32, i32) {
    %c0_i32 = arith.constant 0 : i32
    %c0_i32_0 = arith.constant 0 : i32
    %c0_i32_1 = arith.constant 0 : i32
    return %c0_i32, %c0_i32_0 : i32, i32
  }
  func.func @transform_3(%arg0: i32) -> (i32, i32) {
    %c0_i32 = arith.constant 0 : i32
    %c0_i32_0 = arith.constant 0 : i32
    return %c0_i32, %arg0 : i32, i32
  }
}

module attributes {stable_mosaic.version = 11 : i64} {
  func.func @_matmul_bn_gelu_kernel(%arg0: i32, %arg1: memref<8x256xf32, #tpu.memory_space<vmem>>, %arg2: memref<8x8xf32, #tpu.memory_space<vmem>>, %arg3: memref<8x1xf32, #tpu.memory_space<vmem>>, %arg4: memref<8x256xf32, #tpu.memory_space<vmem>>) attributes {dimension_semantics = [#tpu.dimension_semantics<parallel>], iteration_bounds = array<i64: 8>, scalar_prefetch = 0 : i64, scratch_operands = 0 : i64, tpu.core_type = #tpu.core_type<tc>, window_params = [{transform_indices = @transform_0, window_bounds = array<i64: 8, 256>}, {pipeline_mode = #tpu.pipeline_mode<synchronous>, transform_indices = @transform_1, window_bounds = array<i64: 8, 8>}, {pipeline_mode = #tpu.pipeline_mode<synchronous>, transform_indices = @transform_2, window_bounds = array<i64: 8, 1>}, {transform_indices = @transform_3, window_bounds = array<i64: 8, 256>}]} {
    %c0 = arith.constant 0 : index
    %c0_0 = arith.constant 0 : index
    %0 = vector.load %arg2[%c0, %c0_0] : memref<8x8xf32, #tpu.memory_space<vmem>>, vector<8x8xf32>
    %c0_1 = arith.constant 0 : index
    %c0_2 = arith.constant 0 : index
    %1 = vector.load %arg1[%c0_1, %c0_2] : memref<8x256xf32, #tpu.memory_space<vmem>>, vector<8x256xf32>
    %cst = arith.constant dense<0.000000e+00> : vector<8x256xf32>
    %2 = tpu.matmul %0, %1, %cst {dimension_numbers = #tpu.dot_dimension_numbers<[1], [0], [0], [1], [0, 0, 1, 1], [], []>} : vector<8x8xf32>, vector<8x256xf32>, vector<8x256xf32> -> vector<8x256xf32>
    %c0_3 = arith.constant 0 : index
    %c0_4 = arith.constant 0 : index
    %3 = vector.load %arg3[%c0_3, %c0_4] : memref<8x1xf32, #tpu.memory_space<vmem>>, vector<8x1xf32>
    %4 = vector.broadcast %3 : vector<8x1xf32> to vector<8x256xf32>
    %5 = arith.addf %2, %4 : vector<8x256xf32>
    %cst_5 = arith.constant 5.000000e-01 : f32
    %6 = vector.broadcast %cst_5 : f32 to vector<8x256xf32>
    %7 = arith.mulf %6, %5 : vector<8x256xf32>
    %cst_6 = arith.constant 0.797884583 : f32
    %8 = vector.broadcast %cst_6 : f32 to vector<8x256xf32>
    %9 = arith.mulf %8, %5 : vector<8x256xf32>
    %cst_7 = arith.constant 4.471500e-02 : f32
    %10 = vector.broadcast %cst_7 : f32 to vector<8x256xf32>
    %11 = arith.mulf %10, %5 : vector<8x256xf32>
    %12 = arith.mulf %11, %5 : vector<8x256xf32>
    %cst_8 = arith.constant 1.000000e+00 : f32
    %13 = vector.broadcast %cst_8 : f32 to vector<8x256xf32>
    %14 = arith.addf %13, %12 : vector<8x256xf32>
    %15 = arith.mulf %9, %14 : vector<8x256xf32>
    %16 = math.tanh %15 : vector<8x256xf32>
    %cst_9 = arith.constant 1.000000e+00 : f32
    %17 = vector.broadcast %cst_9 : f32 to vector<8x256xf32>
    %18 = arith.addf %17, %16 : vector<8x256xf32>
    %19 = arith.mulf %7, %18 : vector<8x256xf32>
    %c0_10 = arith.constant 0 : index
    %c0_11 = arith.constant 0 : index
    %20 = vector.load %arg4[%c0_10, %c0_11] : memref<8x256xf32, #tpu.memory_space<vmem>>, vector<8x256xf32>
    tpu.vector_store %arg4[%c0_10, %c0_11], %19 {strides = array<i32>} : memref<8x256xf32, #tpu.memory_space<vmem>>, vector<8x256xf32>,
    return
  }
  func.func @transform_0(%arg0: i32) -> (i32, i32) {
    %c0_i32 = arith.constant 0 : i32
    %c0_i32_0 = arith.constant 0 : i32
    return %c0_i32, %arg0 : i32, i32
  }
  func.func @transform_1(%arg0: i32) -> (i32, i32) {
    %c0_i32 = arith.constant 0 : i32
    %c0_i32_0 = arith.constant 0 : i32
    %c0_i32_1 = arith.constant 0 : i32
    return %c0_i32, %c0_i32_0 : i32, i32
  }
  func.func @transform_2(%arg0: i32) -> (i32, i32) {
    %c0_i32 = arith.constant 0 : i32
    %c0_i32_0 = arith.constant 0 : i32
    %c0_i32_1 = arith.constant 0 : i32
    return %c0_i32, %c0_i32_0 : i32, i32
  }
  func.func @transform_3(%arg0: i32) -> (i32, i32) {
    %c0_i32 = arith.constant 0 : i32
    %c0_i32_0 = arith.constant 0 : i32
    return %c0_i32, %arg0 : i32, i32
  }
}

module attributes {stable_mosaic.version = 11 : i64} {
  func.func @_matmul_bn_gelu_kernel(%arg0: i32, %arg1: memref<432x256xf32, #tpu.memory_space<vmem>>, %arg2: memref<32x432xf32, #tpu.memory_space<vmem>>, %arg3: memref<32x1xf32, #tpu.memory_space<vmem>>, %arg4: memref<32x256xf32, #tpu.memory_space<vmem>>) attributes {dimension_semantics = [#tpu.dimension_semantics<parallel>], iteration_bounds = array<i64: 8>, scalar_prefetch = 0 : i64, scratch_operands = 0 : i64, tpu.core_type = #tpu.core_type<tc>, window_params = [{transform_indices = @transform_0, window_bounds = array<i64: 432, 256>}, {pipeline_mode = #tpu.pipeline_mode<synchronous>, transform_indices = @transform_1, window_bounds = array<i64: 32, 432>}, {pipeline_mode = #tpu.pipeline_mode<synchronous>, transform_indices = @transform_2, window_bounds = array<i64: 32, 1>}, {transform_indices = @transform_3, window_bounds = array<i64: 32, 256>}]} {
    %c0 = arith.constant 0 : index
    %c0_0 = arith.constant 0 : index
    %0 = vector.load %arg2[%c0, %c0_0] : memref<32x432xf32, #tpu.memory_space<vmem>>, vector<32x432xf32>
    %c0_1 = arith.constant 0 : index
    %c0_2 = arith.constant 0 : index
    %1 = vector.load %arg1[%c0_1, %c0_2] : memref<432x256xf32, #tpu.memory_space<vmem>>, vector<432x256xf32>
    %cst = arith.constant dense<0.000000e+00> : vector<32x256xf32>
    %2 = tpu.matmul %0, %1, %cst {dimension_numbers = #tpu.dot_dimension_numbers<[1], [0], [0], [1], [0, 0, 1, 1], [], []>} : vector<32x432xf32>, vector<432x256xf32>, vector<32x256xf32> -> vector<32x256xf32>
    %c0_3 = arith.constant 0 : index
    %c0_4 = arith.constant 0 : index
    %3 = vector.load %arg3[%c0_3, %c0_4] : memref<32x1xf32, #tpu.memory_space<vmem>>, vector<32x1xf32>
    %4 = vector.broadcast %3 : vector<32x1xf32> to vector<32x256xf32>
    %5 = arith.addf %2, %4 : vector<32x256xf32>
    %cst_5 = arith.constant 5.000000e-01 : f32
    %6 = vector.broadcast %cst_5 : f32 to vector<32x256xf32>
    %7 = arith.mulf %6, %5 : vector<32x256xf32>
    %cst_6 = arith.constant 0.797884583 : f32
    %8 = vector.broadcast %cst_6 : f32 to vector<32x256xf32>
    %9 = arith.mulf %8, %5 : vector<32x256xf32>
    %cst_7 = arith.constant 4.471500e-02 : f32
    %10 = vector.broadcast %cst_7 : f32 to vector<32x256xf32>
    %11 = arith.mulf %10, %5 : vector<32x256xf32>
    %12 = arith.mulf %11, %5 : vector<32x256xf32>
    %cst_8 = arith.constant 1.000000e+00 : f32
    %13 = vector.broadcast %cst_8 : f32 to vector<32x256xf32>
    %14 = arith.addf %13, %12 : vector<32x256xf32>
    %15 = arith.mulf %9, %14 : vector<32x256xf32>
    %16 = math.tanh %15 : vector<32x256xf32>
    %cst_9 = arith.constant 1.000000e+00 : f32
    %17 = vector.broadcast %cst_9 : f32 to vector<32x256xf32>
    %18 = arith.addf %17, %16 : vector<32x256xf32>
    %19 = arith.mulf %7, %18 : vector<32x256xf32>
    %c0_10 = arith.constant 0 : index
    %c0_11 = arith.constant 0 : index
    %20 = vector.load %arg4[%c0_10, %c0_11] : memref<32x256xf32, #tpu.memory_space<vmem>>, vector<32x256xf32>
    tpu.vector_store %arg4[%c0_10, %c0_11], %19 {strides = array<i32>} : memref<32x256xf32, #tpu.memory_space<vmem>>, vector<32x256xf32>,
    return
  }
  func.func @transform_0(%arg0: i32) -> (i32, i32) {
    %c0_i32 = arith.constant 0 : i32
    %c0_i32_0 = arith.constant 0 : i32
    return %c0_i32, %arg0 : i32, i32
  }
  func.func @transform_1(%arg0: i32) -> (i32, i32) {
    %c0_i32 = arith.constant 0 : i32
    %c0_i32_0 = arith.constant 0 : i32
    %c0_i32_1 = arith.constant 0 : i32
    return %c0_i32, %c0_i32_0 : i32, i32
  }
  func.func @transform_2(%arg0: i32) -> (i32, i32) {
    %c0_i32 = arith.constant 0 : i32
    %c0_i32_0 = arith.constant 0 : i32
    %c0_i32_1 = arith.constant 0 : i32
    return %c0_i32, %c0_i32_0 : i32, i32
  }
  func.func @transform_3(%arg0: i32) -> (i32, i32) {
    %c0_i32 = arith.constant 0 : i32
    %c0_i32_0 = arith.constant 0 : i32
    return %c0_i32, %arg0 : i32, i32
  }
}

</mosaic_0001>

<llo_original>
// kernel: fwd.3
$region0: #{fwd.3}
  #allocation0 [shape = 'u32[]', space=smem, size = 0x4, offset = 0x4, fixed_abs, tag = 'smem constant byte address 0x4 - core index']
  #allocation1 [shape = 'u32[144,128]{1,0:T(1,128)}', space=vmem, size = 0x12000, scoped, tag = 'internal scratch']
  %s0 = inlined_call_operand.vmem [shape: f32[8,2048], index: 0, kind: input, shape index: {}]
  %s1 = inlined_call_operand.vmem [shape: f32[24,8], index: 1, kind: input, shape index: {}]
  %s2 = inlined_call_operand.vmem [shape: f32[24,1], index: 2, kind: input, shape index: {}]
  %s3 = inlined_call_operand.vmem [shape: f32[24,2048], index: 3, kind: output, shape index: {}]
  %s4 = sld [smem:[#allocation0]]
  $region64: #{fwd.3} parent=0
    _
  %s6 = ssub.s32 1, %s4
  %s7 = scalar_select 0, %s6, %s4
  $region1: #{fwd.3} parent=0
    #allocation2 [shape = 'u8[49152]{0}', space=vmem, size = 0xc000, scoped, tag = 'output window, operand 0']
    loop: start=0, step=1, limit=10
    $region2: #{fwd.3} parent=1 // loop_pre_header
      _
    $region3: #{fwd.3} parent=1 // loop_header
      %s9 = sphi 0, %s13
      %p10 = scmp.ge.s32.totalorder %s9, 10
      %s19 = sphi 0, %s21
      %s22 = sphi 0, %s19
      %s23 = sphi 0, %s22
      %s39 = sphi 0, %s23
      %s43 = sphi 0, %s43
      %s45 = sphi 0, %s43
      %s46 = sphi 0, %s45
      %s60 = sphi 0, %s46
      %s64 = sphi 0, %s64
      %s66 = sphi 0, %s64
      %s67 = sphi 0, %s66
      %s81 = sphi 0, %s67
      %s87 = sphi 0, %s89
      %s90 = sphi 0, %s87
      %s91 = sphi 0, %s90
      %s107 = sphi 0, %s91
    $region4: #{fwd.3} parent=1 // loop_header_branch
      %12 = sbr.rel (%p10) target = $region8
    $region5: #{fwd.3} parent=1 // loop_body
      %s14 = ssub.s32 %s9, 1
      %s15 = ssub.s32 %s9, 2
      %s16 = sadd.s32 %s9, 1
      %s17 = ssub.s32 %s9, %s16
      %p18 = scmp.eq.s32.totalorder %s17, 0
      %s20 = sadd.s32 %s19, 1
      %s21 = scalar_select %p18, %s19, %s20
      %p24 = pneg %p18
      %p25 = scmp.eq.s32.totalorder %s9, 7
      %p26 = por %p24, %p25
      %p27 = scmp.ne.s32.totalorder %s19, %s22
      %p28 = scmp.eq.s32.totalorder %s9, 0
      %p29 = por %p27, %p28
      %p30 = scmp.ne.s32.totalorder %s19, %s22
      %p31 = scmp.eq.s32.totalorder %s14, 7
      %p32 = por %p30, %p31
      %p33 = scmp.ne.s32.totalorder %s22, %s23
      %p34 = scmp.eq.s32.totalorder %s14, 0
      %p35 = por %p33, %p34
      %p36 = scmp.ne.s32.totalorder %s22, %s23
      %p37 = scmp.eq.s32.totalorder %s15, 7
      %p38 = por %p36, %p37
      %p40 = scmp.ne.s32.totalorder %s23, %s39
      %p41 = scmp.eq.s32.totalorder %s15, 0
      %p42 = por %p40, %p41
      %s44 = sadd.s32 %s43, 1
      %p47 = scmp.eq.s32.totalorder %s9, 7
      %p48 = scmp.ne.s32.totalorder %s43, %s45
      %p49 = scmp.eq.s32.totalorder %s9, 0
      %p50 = por %p48, %p49
      %p51 = scmp.ne.s32.totalorder %s43, %s45
      %p52 = scmp.eq.s32.totalorder %s14, 7
      %p53 = por %p51, %p52
      %p54 = scmp.ne.s32.totalorder %s45, %s46
      %p55 = scmp.eq.s32.totalorder %s14, 0
      %p56 = por %p54, %p55
      %p57 = scmp.ne.s32.totalorder %s45, %s46
      %p58 = scmp.eq.s32.totalorder %s15, 7
      %p59 = por %p57, %p58
      %p61 = scmp.ne.s32.totalorder %s46, %s60
      %p62 = scmp.eq.s32.totalorder %s15, 0
      %p63 = por %p61, %p62
      %s65 = sadd.s32 %s64, 1
      %p68 = scmp.eq.s32.totalorder %s9, 7
      %p69 = scmp.ne.s32.totalorder %s64, %s66
      %p70 = scmp.eq.s32.totalorder %s9, 0
      %p71 = por %p69, %p70
      %p72 = scmp.ne.s32.totalorder %s64, %s66
      %p73 = scmp.eq.s32.totalorder %s14, 7
      %p74 = por %p72, %p73
      %p75 = scmp.ne.s32.totalorder %s66, %s67
      %p76 = scmp.eq.s32.totalorder %s14, 0
      %p77 = por %p75, %p76
      %p78 = scmp.ne.s32.totalorder %s66, %s67
      %p79 = scmp.eq.s32.totalorder %s15, 7
      %p80 = por %p78, %p79
      %p82 = scmp.ne.s32.totalorder %s67, %s81
      %p83 = scmp.eq.s32.totalorder %s15, 0
      %p84 = por %p82, %p83
      %s85 = ssub.s32 %s9, %s16
      %p86 = scmp.eq.s32.totalorder %s85, 0
      %s88 = sadd.s32 %s87, 1
      %s89 = scalar_select %p86, %s87, %s88
      %p92 = pneg %p86
      %p93 = scmp.eq.s32.totalorder %s9, 7
      %p94 = por %p92, %p93
      %p95 = scmp.ne.s32.totalorder %s87, %s90
      %p96 = scmp.eq.s32.totalorder %s9, 0
      %p97 = por %p95, %p96
      %p98 = scmp.ne.s32.totalorder %s87, %s90
      %p99 = scmp.eq.s32.totalorder %s14, 7
      %p100 = por %p98, %p99
      %p101 = scmp.ne.s32.totalorder %s90, %s91
      %p102 = scmp.eq.s32.totalorder %s14, 0
      %p103 = por %p101, %p102
      %p104 = scmp.ne.s32.totalorder %s90, %s91
      %p105 = scmp.eq.s32.totalorder %s15, 7
      %p106 = por %p104, %p105
      %p108 = scmp.ne.s32.totalorder %s91, %s107
      %p109 = scmp.eq.s32.totalorder %s15, 0
      %p110 = por %p108, %p109
      %p111 = scmp.le.s32.totalorder 1, %s9
      %p112 = scmp.lt.s32.totalorder %s9, 9
      %p113 = pnand %p111, %p112
      %p114 = pneg %p113
      // Predicated region
      $region9: #{fwd.3} parent=5 // pred_check
        _
      $region10: #{fwd.3} parent=5 // pred_check_branch
        %116 = sbr.rel (%p113) target = $region12
      $region11: #{fwd.3} parent=5 // pred_region
        %s117 = ssub.s32 %s9, 1
        // Predicated region
        $region13: #{fwd.3} parent=11 // pred_check
          %p118 = pneg %p56
        $region14: #{fwd.3} parent=11 // pred_check_branch
          %120 = sbr.rel (%p118) target = $region16
        $region15: #{fwd.3} parent=11 // pred_region
          _
        $region16: #{fwd.3} parent=11 // pred_fallthru
          _
        // Predicated region
        $region17: #{fwd.3} parent=11 // pred_check
          %p121 = pneg %p77
        $region18: #{fwd.3} parent=11 // pred_check_branch
          %123 = sbr.rel (%p121) target = $region20
        $region19: #{fwd.3} parent=11 // pred_region
          _
        $region20: #{fwd.3} parent=11 // pred_fallthru
          _
      $region12: #{fwd.3} parent=5 // pred_fallthru
        _
      %p124 = scmp.lt.s32.totalorder %s9, 8
      // Predicated region
      $region21: #{fwd.3} parent=5 // pred_check
        %p125 = pneg %p124
      $region22: #{fwd.3} parent=5 // pred_check_branch
        %127 = sbr.rel (%p125) target = $region24
      $region23: #{fwd.3} parent=5 // pred_region
        // Predicated region
        $region25: #{fwd.3} parent=23 // pred_check
          %p128 = pneg %p29
        $region26: #{fwd.3} parent=23 // pred_check_branch
          %130 = sbr.rel (%p128) target = $region28
        $region27: #{fwd.3} parent=23 // pred_region
          %s131 = smul.u32 2, %s9
          %p132 = scmp.lt.s32.totalorder %s131, 15
          %s133 = scalar_select %p132, %s131, 15
          %s134 = smul.addr %s133, 8
          %s135 = scalar_lea.vmem %s0, %s134
          %s136 = smul.u32 2, %s9
        $region28: #{fwd.3} parent=23 // pred_fallthru
          _
      $region24: #{fwd.3} parent=5 // pred_fallthru
        _
      %p137 = scmp.le.s32.totalorder 1, %s9
      %p138 = scmp.lt.s32.totalorder %s9, 9
      %p139 = pnand %p137, %p138
      %p140 = pneg %p139
      // Predicated region
      $region29: #{fwd.3} parent=5 // pred_check
        _
      $region30: #{fwd.3} parent=5 // pred_check_branch
        %142 = sbr.rel (%p139) target = $region32
      $region31: #{fwd.3} parent=5 // pred_region
        %s143 = ssub.s32 %s9, 1
        %s144 = smul.u32 2, %s14
        %p145 = scmp.lt.s32.totalorder %s144, 15
        %s146 = scalar_select %p145, %s144, 15
        %s147 = smul.addr %s146, 8
        %s148 = scalar_lea.vmem %s0, %s147
        %p149 = pneg %p35
        %p150 = pneg %p32
        %p151 = pneg %p56
        %p152 = pneg %p53
        %p153 = pneg %p77
        %p154 = pneg %p74
        %p155 = pneg %p103
        %p156 = pneg %p100
        %s157 = sand.u32 %s90, 1
        %s158 = sand.u32 %s90, 1
        %s159 = smul.addr %s158, 48
        %s160 = scalar_lea.vmem [#allocation2], %s159
        %s161 = smul.u32 2, %s14
        %p162 = scmp.lt.s32.totalorder %s161, 15
        %s163 = scalar_select %p162, %s161, 15
        %s164 = smul.addr %s163, 8
        %s165 = scalar_lea.vmem %s0, %s164
        %s166 = smul.u32 2, %s14
        %s167 = smul.u32 2, %s14
        %v168 = vld [vmem:[%s1] sm:$0xff]
        %v169 = vld [vmem:[%s1 + $0x8] sm:$0xff]
        %v170 = vld [vmem:[%s1 + $0x10] sm:$0xff]
        %v171 = vld [vmem:[%s165] sm:$0xff]
        %v172 = vld [vmem:[%s165 + $0x8] sm:$0xff]
        %v173 = vld [vmem:[%s2] sm:$0xff]
        %v174 = vld [vmem:[%s2 + $0x8] sm:$0xff]
        %v175 = vld [vmem:[%s2 + $0x10] sm:$0xff]
        %177 = vset.pattern.permute.xlu0 0
        %178 = vperm.xlu0 %177, %v173
        %v179 = vpop.permute.xlu0 %178
        %182 = vset.pattern.permute.xlu0 0
        %183 = vperm.xlu0 %182, %v174
        %v184 = vpop.permute.xlu0 %183
        %187 = vset.pattern.permute.xlu0 0
        %188 = vperm.xlu0 %187, %v175
        %v189 = vpop.permute.xlu0 %188
        %vm191 = vcmask 64512
        %v193 = vsel %vm191, %v168, 0
        %v196 = vsel %vm191, %v169, 0
        %v199 = vsel %vm191, %v170, 0
        %201 = vmatprep.subr.mxu0 %v172
        %202 = vmatpush1.msra.mxu0 %v171
        %203 = vmatprep.subr.mxu0 0.0
        %204 = vmatpush1.msra.mxu0 0.0
        %205 = vmatprep.subr.mxu0 0.0
        %206 = vmatpush1.msra.mxu0 0.0
        %207 = vmatprep.subr.mxu0 0.0
        %208 = vmatpush1.msra.mxu0 0.0
        %209 = vmatprep.subr.mxu0 0.0
        %210 = vmatpush1.msra.mxu0 0.0
        %211 = vmatprep.subr.mxu0 0.0
        %212 = vmatpush1.msra.mxu0 0.0
        %213 = vmatprep.subr.mxu0 0.0
        %214 = vmatpush1.msra.mxu0 0.0
        %215 = vmatprep.subr.mxu0 0.0
        %216 = vmatpush1.msra.mxu0 0.0
        %217 = vmatprep.subr.mxu0 0.0
        %218 = vmatpush1.msra.mxu0 0.0
        %219 = vmatprep.subr.mxu0 0.0
        %220 = vmatpush1.msra.mxu0 0.0
        %221 = vmatprep.subr.mxu0 0.0
        %222 = vmatpush1.msra.mxu0 0.0
        %223 = vmatprep.subr.mxu0 0.0
        %224 = vmatpush1.msra.mxu0 0.0
        %225 = vmatprep.subr.mxu0 0.0
        %226 = vmatpush1.msra.mxu0 0.0
        %227 = vmatprep.subr.mxu0 0.0
        %228 = vmatpush1.msra.mxu0 0.0
        %229 = vmatprep.subr.mxu0 0.0
        %230 = vmatpush1.msra.mxu0 0.0
        %231 = vmatprep.subr.mxu0 0.0
        %232 = vmatpush1.msra.mxu0 0.0
        %233 = vmatprep.subr.mxu0 0.0
        %234 = vmatpush1.msra.mxu0 0.0
        %235 = vmatprep.subr.mxu0 0.0
        %236 = vmatpush1.msra.mxu0 0.0
        %237 = vmatprep.subr.mxu0 0.0
        %238 = vmatpush1.msra.mxu0 0.0
        %239 = vmatprep.subr.mxu0 0.0
        %240 = vmatpush1.msra.mxu0 0.0
        %241 = vmatprep.subr.mxu0 0.0
        %242 = vmatpush1.msra.mxu0 0.0
        %243 = vmatprep.subr.mxu0 0.0
        %244 = vmatpush1.msra.mxu0 0.0
        %245 = vmatprep.subr.mxu0 0.0
        %246 = vmatpush1.msra.mxu0 0.0
        %247 = vmatprep.subr.mxu0 0.0
        %248 = vmatpush1.msra.mxu0 0.0
        %249 = vmatprep.subr.mxu0 0.0
        %250 = vmatpush1.msra.mxu0 0.0
        %251 = vmatprep.subr.mxu0 0.0
        %252 = vmatpush1.msra.mxu0 0.0
        %253 = vmatprep.subr.mxu0 0.0
        %254 = vmatpush1.msra.mxu0 0.0
        %255 = vmatprep.subr.mxu0 0.0
        %256 = vmatpush1.msra.mxu0 0.0
        %257 = vmatprep.subr.mxu0 0.0
        %258 = vmatpush1.msra.mxu0 0.0
        %259 = vmatprep.subr.mxu0 0.0
        %260 = vmatpush1.msra.mxu0 0.0
        %261 = vmatprep.subr.mxu0 0.0
        %262 = vmatpush1.msra.mxu0 0.0
        %263 = vmatprep.subr.mxu0 0.0
        %264 = vmatpush1.msra.mxu0 0.0
        %265 = vmatprep.mubr.f32.mxu0 0.0
        %266 = vmatmul.mubr.f32.gmra.mrb[0].mxu0 %v193
        %v267 = vpop.f32.mrb[0].mxu0
        %v268 = vadd.f32 %v179, %v267
        %v269 = vpop.f32.mrb[0].mxu0
        %v270 = vadd.f32 %v179, %v269
        %271 = vmatprep.mubr.f32.mxu0 0.0
        %272 = vmatmul.mubr.f32.gmra.mrb[0].mxu0 %v196
        %v273 = vpop.f32.mrb[0].mxu0
        %v274 = vadd.f32 %v184, %v273
        %v275 = vpop.f32.mrb[0].mxu0
        %v276 = vadd.f32 %v184, %v275
        %277 = vmatprep.mubr.f32.mxu0 0.0
        %278 = vmatmul.mubr.f32.gmra.mrb[0].mxu0 %v199
        %v279 = vpop.f32.mrb[0].mxu0
        %v280 = vadd.f32 %v189, %v279
        %v281 = vpop.f32.mrb[0].mxu0
        %v282 = vadd.f32 %v189, %v281
        %283 = vdwg.mxu0
        %v284 = vmul.f32 %v268, 0.5
        %v285 = vmul.f32 %v270, 0.5
        %v286 = vmul.f32 %v274, 0.5
        %v287 = vmul.f32 %v276, 0.5
        %v288 = vmul.f32 %v280, 0.5
        %v289 = vmul.f32 %v282, 0.5
        %v290 = vmul.f32 %v268, 0.7978846
        %v291 = vmul.f32 %v270, 0.7978846
        %v292 = vmul.f32 %v274, 0.7978846
        %v293 = vmul.f32 %v276, 0.7978846
        %v294 = vmul.f32 %v280, 0.7978846
        %v295 = vmul.f32 %v282, 0.7978846
        %v296 = vmul.f32 %v268, 0.044715
        %v297 = vmul.f32 %v270, 0.044715
        %v298 = vmul.f32 %v274, 0.044715
        %v299 = vmul.f32 %v276, 0.044715
        %v300 = vmul.f32 %v280, 0.044715
        %v301 = vmul.f32 %v282, 0.044715
        %v302 = vmul.f32 %v296, %v268
        %v303 = vmul.f32 %v297, %v270
        %v304 = vmul.f32 %v298, %v274
        %v305 = vmul.f32 %v299, %v276
        %v306 = vmul.f32 %v300, %v280
        %v307 = vmul.f32 %v301, %v282
        %v308 = vadd.f32 %v302, 1.0
        %v309 = vadd.f32 %v303, 1.0
        %v310 = vadd.f32 %v304, 1.0
        %v311 = vadd.f32 %v305, 1.0
        %v312 = vadd.f32 %v306, 1.0
        %v313 = vadd.f32 %v307, 1.0
        %v314 = vmul.f32 %v290, %v308
        %v315 = vmul.f32 %v291, %v309
        %v316 = vmul.f32 %v292, %v310
        %v317 = vmul.f32 %v293, %v311
        %v318 = vmul.f32 %v294, %v312
        %v319 = vmul.f32 %v295, %v313
        %v320 = vtanh.pop %v314
        %v321 = vtanh.pop %v315
        %v322 = vtanh.pop %v316
        %v323 = vtanh.pop %v317
        %v324 = vtanh.pop %v318
        %v325 = vtanh.pop %v319
        %v326 = vadd.f32 %v320, 1.0
        %v327 = vadd.f32 %v321, 1.0
        %v328 = vadd.f32 %v322, 1.0
        %v329 = vadd.f32 %v323, 1.0
        %v330 = vadd.f32 %v324, 1.0
        %v331 = vadd.f32 %v325, 1.0
        %v332 = vmul.f32 %v284, %v326
        %v333 = vmul.f32 %v285, %v327
        %v334 = vmul.f32 %v286, %v328
        %v335 = vmul.f32 %v287, %v329
        %v336 = vmul.f32 %v288, %v330
        %v337 = vmul.f32 %v289, %v331
        %338 = vst [vmem:[%s160] sm:$0xff] %v332
        %339 = vst [vmem:[%s160 + $0x8] sm:$0xff] %v333
        %340 = vst [vmem:[%s160 + $0x10] sm:$0xff] %v334
        %341 = vst [vmem:[%s160 + $0x18] sm:$0xff] %v335
        %342 = vst [vmem:[%s160 + $0x20] sm:$0xff] %v336
        %343 = vst [vmem:[%s160 + $0x28] sm:$0xff] %v337
        %s344 = sand.u32 %s90, 1
        %s345 = sand.u32 %s90, 1
        %s346 = smul.addr %s345, 48
        %s347 = scalar_lea.vmem [#allocation2], %s346
        // Predicated region
        $region33: #{fwd.3} parent=31 // pred_check
          %p348 = pneg %p100
        $region34: #{fwd.3} parent=31 // pred_check_branch
          %350 = sbr.rel (%p348) target = $region36
        $region35: #{fwd.3} parent=31 // pred_region
          %s351 = smul.u32 2, %s14
          %s352 = smul.addr %s351, 8
          %s353 = scalar_lea.vmem %s3, %s352
          // Predicated region
          $region37: #{fwd.3} parent=35 // pred_check
            _
          $region38: #{fwd.3} parent=35 // pred_check_branch
            %355 = sbr.rel (0) target = $region40
          $region39: #{fwd.3} parent=35 // pred_region
            // Predicated region
            $region41: #{fwd.3} parent=39 // pred_check
              _
            $region42: #{fwd.3} parent=39 // pred_check_branch
              %357 = sbr.rel (0) target = $region44
            $region43: #{fwd.3} parent=39 // pred_region
              loop: start=0, step=1, limit=1
              $region45: #{fwd.3} parent=43 // loop_pre_header
                _
              $region46: #{fwd.3} parent=43 // loop_header
                %s359 = sphi 0, %s363
                %p360 = scmp.ge.s32.totalorder %s359, 1
                %s364 = sphi %s347, %s347
                %s365 = sphi %s353, %s353
              $region47: #{fwd.3} parent=43 // loop_header_branch
                %362 = sbr.rel (%p360) target = $region51
              $region48: #{fwd.3} parent=43 // loop_body
                %v366 = vld [vmem:[%s364] sm:$0xff]
                %367 = vst [vmem:[%s365] sm:$0xff] %v366
                %v368 = vld [vmem:[%s364 + $0x8] sm:$0xff]
                %369 = vst [vmem:[%s365 + $0x8] sm:$0xff] %v368
                %v370 = vld [vmem:[%s364 + $0x10] sm:$0xff]
                %371 = vst [vmem:[%s365 + $0x80] sm:$0xff] %v370
                %v372 = vld [vmem:[%s364 + $0x18] sm:$0xff]
                %373 = vst [vmem:[%s365 + $0x88] sm:$0xff] %v372
                %v374 = vld [vmem:[%s364 + $0x20] sm:$0xff]
                %375 = vst [vmem:[%s365 + $0x100] sm:$0xff] %v374
                %v376 = vld [vmem:[%s364 + $0x28] sm:$0xff]
                %377 = vst [vmem:[%s365 + $0x108] sm:$0xff] %v376
              $region49: #{fwd.3} parent=43 // loop_footer
                %s363 = sadd.s32 1, %s359
              $region50: #{fwd.3} parent=43 // loop_footer_branch
                %358 = sbr.rel target = $region46
              $region51: #{fwd.3} parent=43 // loop_exit
                _
            $region44: #{fwd.3} parent=39 // pred_fallthru
              _
            // Predicated region
            $region52: #{fwd.3} parent=39 // pred_check
              _
            $region53: #{fwd.3} parent=39 // pred_check_branch
              %379 = sbr.rel target = $region55
            $region54: #{fwd.3} parent=39 // pred_region
              _
            $region55: #{fwd.3} parent=39 // pred_fallthru
              _
          $region40: #{fwd.3} parent=35 // pred_fallthru
            _
          %380 = vnop
        $region36: #{fwd.3} parent=31 // pred_fallthru
          _
      $region32: #{fwd.3} parent=5 // pred_fallthru
        _
      %p381 = scmp.le.s32.totalorder 2, %s9
      // Predicated region
      $region56: #{fwd.3} parent=5 // pred_check
        %p382 = pneg %p381
      $region57: #{fwd.3} parent=5 // pred_check_branch
        %384 = sbr.rel (%p382) target = $region59
      $region58: #{fwd.3} parent=5 // pred_region
        %s385 = ssub.s32 %s9, 2
        // Predicated region
        $region60: #{fwd.3} parent=58 // pred_check
          %p386 = pneg %p106
        $region61: #{fwd.3} parent=58 // pred_check_branch
          %388 = sbr.rel (%p386) target = $region63
        $region62: #{fwd.3} parent=58 // pred_region
          %s389 = sand.u32 %s91, 1
          %s390 = sand.u32 %s91, 1
          %s391 = smul.addr %s390, 48
          %s392 = scalar_lea.vmem [#allocation2], %s391
        $region63: #{fwd.3} parent=58 // pred_fallthru
          _
      $region59: #{fwd.3} parent=5 // pred_fallthru
        _
    $region6: #{fwd.3} parent=1 // loop_footer
      %s13 = sadd.s32 1, %s9
    $region7: #{fwd.3} parent=1 // loop_footer_branch
      %8 = sbr.rel target = $region3
    $region8: #{fwd.3} parent=1 // loop_exit
      _

// kernel: fwd.5
$region0: #{fwd.5}
  #allocation0 [shape = 'u32[]', space=smem, size = 0x4, offset = 0x4, fixed_abs, tag = 'smem constant byte address 0x4 - core index']
  #allocation1 [shape = 'u32[144,128]{1,0:T(1,128)}', space=vmem, size = 0x12000, scoped, tag = 'internal scratch']
  %s0 = inlined_call_operand.vmem [shape: f32[8,2048], index: 0, kind: input, shape index: {}]
  %s1 = inlined_call_operand.vmem [shape: f32[8,8], index: 1, kind: input, shape index: {}]
  %s2 = inlined_call_operand.vmem [shape: f32[8,1], index: 2, kind: input, shape index: {}]
  %s3 = inlined_call_operand.vmem [shape: f32[8,2048], index: 3, kind: output, shape index: {}]
  %s4 = sld [smem:[#allocation0]]
  $region45: #{fwd.5} parent=0
    _
  %s6 = ssub.s32 1, %s4
  %s7 = scalar_select 0, %s6, %s4
  loop: start=0, step=1, limit=10
  $region2: #{fwd.5} parent=0 // loop_pre_header
    _
  $region3: #{fwd.5} parent=0 // loop_header
    %s9 = sphi 0, %s13
    %p10 = scmp.ge.s32.totalorder %s9, 10
    %s19 = sphi 0, %s21
    %s22 = sphi 0, %s19
    %s23 = sphi 0, %s22
    %s39 = sphi 0, %s23
    %s43 = sphi 0, %s43
    %s45 = sphi 0, %s43
    %s46 = sphi 0, %s45
    %s60 = sphi 0, %s46
    %s64 = sphi 0, %s64
    %s66 = sphi 0, %s64
    %s67 = sphi 0, %s66
    %s81 = sphi 0, %s67
    %s87 = sphi 0, %s89
    %s90 = sphi 0, %s87
    %s91 = sphi 0, %s90
    %s107 = sphi 0, %s91
  $region4: #{fwd.5} parent=0 // loop_header_branch
    %12 = sbr.rel (%p10) target = $region8
  $region5: #{fwd.5} parent=0 // loop_body
    %s14 = ssub.s32 %s9, 1
    %s15 = ssub.s32 %s9, 2
    %s16 = sadd.s32 %s9, 1
    %s17 = ssub.s32 %s9, %s16
    %p18 = scmp.eq.s32.totalorder %s17, 0
    %s20 = sadd.s32 %s19, 1
    %s21 = scalar_select %p18, %s19, %s20
    %p24 = pneg %p18
    %p25 = scmp.eq.s32.totalorder %s9, 7
    %p26 = por %p24, %p25
    %p27 = scmp.ne.s32.totalorder %s19, %s22
    %p28 = scmp.eq.s32.totalorder %s9, 0
    %p29 = por %p27, %p28
    %p30 = scmp.ne.s32.totalorder %s19, %s22
    %p31 = scmp.eq.s32.totalorder %s14, 7
    %p32 = por %p30, %p31
    %p33 = scmp.ne.s32.totalorder %s22, %s23
    %p34 = scmp.eq.s32.totalorder %s14, 0
    %p35 = por %p33, %p34
    %p36 = scmp.ne.s32.totalorder %s22, %s23
    %p37 = scmp.eq.s32.totalorder %s15, 7
    %p38 = por %p36, %p37
    %p40 = scmp.ne.s32.totalorder %s23, %s39
    %p41 = scmp.eq.s32.totalorder %s15, 0
    %p42 = por %p40, %p41
    %s44 = sadd.s32 %s43, 1
    %p47 = scmp.eq.s32.totalorder %s9, 7
    %p48 = scmp.ne.s32.totalorder %s43, %s45
    %p49 = scmp.eq.s32.totalorder %s9, 0
    %p50 = por %p48, %p49
    %p51 = scmp.ne.s32.totalorder %s43, %s45
    %p52 = scmp.eq.s32.totalorder %s14, 7
    %p53 = por %p51, %p52
    %p54 = scmp.ne.s32.totalorder %s45, %s46
    %p55 = scmp.eq.s32.totalorder %s14, 0
    %p56 = por %p54, %p55
    %p57 = scmp.ne.s32.totalorder %s45, %s46
    %p58 = scmp.eq.s32.totalorder %s15, 7
    %p59 = por %p57, %p58
    %p61 = scmp.ne.s32.totalorder %s46, %s60
    %p62 = scmp.eq.s32.totalorder %s15, 0
    %p63 = por %p61, %p62
    %s65 = sadd.s32 %s64, 1
    %p68 = scmp.eq.s32.totalorder %s9, 7
    %p69 = scmp.ne.s32.totalorder %s64, %s66
    %p70 = scmp.eq.s32.totalorder %s9, 0
    %p71 = por %p69, %p70
    %p72 = scmp.ne.s32.totalorder %s64, %s66
    %p73 = scmp.eq.s32.totalorder %s14, 7
    %p74 = por %p72, %p73
    %p75 = scmp.ne.s32.totalorder %s66, %s67
    %p76 = scmp.eq.s32.totalorder %s14, 0
    %p77 = por %p75, %p76
    %p78 = scmp.ne.s32.totalorder %s66, %s67
    %p79 = scmp.eq.s32.totalorder %s15, 7
    %p80 = por %p78, %p79
    %p82 = scmp.ne.s32.totalorder %s67, %s81
    %p83 = scmp.eq.s32.totalorder %s15, 0
    %p84 = por %p82, %p83
    %s85 = ssub.s32 %s9, %s16
    %p86 = scmp.eq.s32.totalorder %s85, 0
    %s88 = sadd.s32 %s87, 1
    %s89 = scalar_select %p86, %s87, %s88
    %p92 = pneg %p86
    %p93 = scmp.eq.s32.totalorder %s9, 7
    %p94 = por %p92, %p93
    %p95 = scmp.ne.s32.totalorder %s87, %s90
    %p96 = scmp.eq.s32.totalorder %s9, 0
    %p97 = por %p95, %p96
    %p98 = scmp.ne.s32.totalorder %s87, %s90
    %p99 = scmp.eq.s32.totalorder %s14, 7
    %p100 = por %p98, %p99
    %p101 = scmp.ne.s32.totalorder %s90, %s91
    %p102 = scmp.eq.s32.totalorder %s14, 0
    %p103 = por %p101, %p102
    %p104 = scmp.ne.s32.totalorder %s90, %s91
    %p105 = scmp.eq.s32.totalorder %s15, 7
    %p106 = por %p104, %p105
    %p108 = scmp.ne.s32.totalorder %s91, %s107
    %p109 = scmp.eq.s32.totalorder %s15, 0
    %p110 = por %p108, %p109
    %p111 = scmp.le.s32.totalorder 1, %s9
    %p112 = scmp.lt.s32.totalorder %s9, 9
    %p113 = pnand %p111, %p112
    %p114 = pneg %p113
    // Predicated region
    $region9: #{fwd.5} parent=5 // pred_check
      _
    $region10: #{fwd.5} parent=5 // pred_check_branch
      %116 = sbr.rel (%p113) target = $region12
    $region11: #{fwd.5} parent=5 // pred_region
      %s117 = ssub.s32 %s9, 1
      // Predicated region
      $region13: #{fwd.5} parent=11 // pred_check
        %p118 = pneg %p56
      $region14: #{fwd.5} parent=11 // pred_check_branch
        %120 = sbr.rel (%p118) target = $region16
      $region15: #{fwd.5} parent=11 // pred_region
        _
      $region16: #{fwd.5} parent=11 // pred_fallthru
        _
      // Predicated region
      $region17: #{fwd.5} parent=11 // pred_check
        %p121 = pneg %p77
      $region18: #{fwd.5} parent=11 // pred_check_branch
        %123 = sbr.rel (%p121) target = $region20
      $region19: #{fwd.5} parent=11 // pred_region
        _
      $region20: #{fwd.5} parent=11 // pred_fallthru
        _
    $region12: #{fwd.5} parent=5 // pred_fallthru
      _
    %p124 = scmp.lt.s32.totalorder %s9, 8
    // Predicated region
    $region21: #{fwd.5} parent=5 // pred_check
      %p125 = pneg %p124
    $region22: #{fwd.5} parent=5 // pred_check_branch
      %127 = sbr.rel (%p125) target = $region24
    $region23: #{fwd.5} parent=5 // pred_region
      // Predicated region
      $region25: #{fwd.5} parent=23 // pred_check
        %p128 = pneg %p29
      $region26: #{fwd.5} parent=23 // pred_check_branch
        %130 = sbr.rel (%p128) target = $region28
      $region27: #{fwd.5} parent=23 // pred_region
        %s131 = smul.u32 2, %s9
        %p132 = scmp.lt.s32.totalorder %s131, 15
        %s133 = scalar_select %p132, %s131, 15
        %s134 = smul.addr %s133, 8
        %s135 = scalar_lea.vmem %s0, %s134
        %s136 = smul.u32 2, %s9
      $region28: #{fwd.5} parent=23 // pred_fallthru
        _
    $region24: #{fwd.5} parent=5 // pred_fallthru
      _
    %p137 = scmp.le.s32.totalorder 1, %s9
    %p138 = scmp.lt.s32.totalorder %s9, 9
    %p139 = pnand %p137, %p138
    %p140 = pneg %p139
    // Predicated region
    $region29: #{fwd.5} parent=5 // pred_check
      _
    $region30: #{fwd.5} parent=5 // pred_check_branch
      %142 = sbr.rel (%p139) target = $region32
    $region31: #{fwd.5} parent=5 // pred_region
      %s143 = ssub.s32 %s9, 1
      %s144 = smul.u32 2, %s14
      %p145 = scmp.lt.s32.totalorder %s144, 15
      %s146 = scalar_select %p145, %s144, 15
      %s147 = smul.addr %s146, 8
      %s148 = scalar_lea.vmem %s0, %s147
      %p149 = pneg %p35
      %p150 = pneg %p32
      %p151 = pneg %p56
      %p152 = pneg %p53
      %p153 = pneg %p77
      %p154 = pneg %p74
      %p155 = pneg %p103
      %p156 = pneg %p100
      %s157 = smul.u32 2, %s14
      %p158 = scmp.lt.s32.totalorder %s157, 15
      %s159 = scalar_select %p158, %s157, 15
      %s160 = smul.addr %s159, 8
      %s161 = scalar_lea.vmem %s3, %s160
      %s162 = smul.u32 2, %s14
      %p163 = scmp.lt.s32.totalorder %s162, 15
      %s164 = scalar_select %p163, %s162, 15
      %s165 = smul.addr %s164, 8
      %s166 = scalar_lea.vmem %s0, %s165
      %s167 = smul.u32 2, %s14
      %s168 = smul.u32 2, %s14
      %p169 = scmp.lt.s32.totalorder %s168, 15
      %s170 = scalar_select %p169, %s168, 15
      %s171 = smul.addr %s170, 8
      %s172 = scalar_lea.vmem %s3, %s171
      %s173 = smul.u32 2, %s14
      %v174 = vld [vmem:[%s1] sm:$0xff]
      %v175 = vld [vmem:[%s166] sm:$0xff]
      %v176 = vld [vmem:[%s166 + $0x8] sm:$0xff]
      %v177 = vld [vmem:[%s2] sm:$0xff]
      %179 = vset.pattern.permute.xlu0 0
      %180 = vperm.xlu0 %179, %v177
      %v181 = vpop.permute.xlu0 %180
      %vm183 = vcmask 64512
      %v185 = vsel %vm183, %v174, 0
      %187 = vmatprep.subr.mxu0 %v176
      %188 = vmatpush1.msra.mxu0 %v175
      %189 = vmatprep.subr.mxu0 0.0
      %190 = vmatpush1.msra.mxu0 0.0
      %191 = vmatprep.subr.mxu0 0.0
      %192 = vmatpush1.msra.mxu0 0.0
      %193 = vmatprep.subr.mxu0 0.0
      %194 = vmatpush1.msra.mxu0 0.0
      %195 = vmatprep.subr.mxu0 0.0
      %196 = vmatpush1.msra.mxu0 0.0
      %197 = vmatprep.subr.mxu0 0.0
      %198 = vmatpush1.msra.mxu0 0.0
      %199 = vmatprep.subr.mxu0 0.0
      %200 = vmatpush1.msra.mxu0 0.0
      %201 = vmatprep.subr.mxu0 0.0
      %202 = vmatpush1.msra.mxu0 0.0
      %203 = vmatprep.subr.mxu0 0.0
      %204 = vmatpush1.msra.mxu0 0.0
      %205 = vmatprep.subr.mxu0 0.0
      %206 = vmatpush1.msra.mxu0 0.0
      %207 = vmatprep.subr.mxu0 0.0
      %208 = vmatpush1.msra.mxu0 0.0
      %209 = vmatprep.subr.mxu0 0.0
      %210 = vmatpush1.msra.mxu0 0.0
      %211 = vmatprep.subr.mxu0 0.0
      %212 = vmatpush1.msra.mxu0 0.0
      %213 = vmatprep.subr.mxu0 0.0
      %214 = vmatpush1.msra.mxu0 0.0
      %215 = vmatprep.subr.mxu0 0.0
      %216 = vmatpush1.msra.mxu0 0.0
      %217 = vmatprep.subr.mxu0 0.0
      %218 = vmatpush1.msra.mxu0 0.0
      %219 = vmatprep.subr.mxu0 0.0
      %220 = vmatpush1.msra.mxu0 0.0
      %221 = vmatprep.subr.mxu0 0.0
      %222 = vmatpush1.msra.mxu0 0.0
      %223 = vmatprep.subr.mxu0 0.0
      %224 = vmatpush1.msra.mxu0 0.0
      %225 = vmatprep.subr.mxu0 0.0
      %226 = vmatpush1.msra.mxu0 0.0
      %227 = vmatprep.subr.mxu0 0.0
      %228 = vmatpush1.msra.mxu0 0.0
      %229 = vmatprep.subr.mxu0 0.0
      %230 = vmatpush1.msra.mxu0 0.0
      %231 = vmatprep.subr.mxu0 0.0
      %232 = vmatpush1.msra.mxu0 0.0
      %233 = vmatprep.subr.mxu0 0.0
      %234 = vmatpush1.msra.mxu0 0.0
      %235 = vmatprep.subr.mxu0 0.0
      %236 = vmatpush1.msra.mxu0 0.0
      %237 = vmatprep.subr.mxu0 0.0
      %238 = vmatpush1.msra.mxu0 0.0
      %239 = vmatprep.subr.mxu0 0.0
      %240 = vmatpush1.msra.mxu0 0.0
      %241 = vmatprep.subr.mxu0 0.0
      %242 = vmatpush1.msra.mxu0 0.0
      %243 = vmatprep.subr.mxu0 0.0
      %244 = vmatpush1.msra.mxu0 0.0
      %245 = vmatprep.subr.mxu0 0.0
      %246 = vmatpush1.msra.mxu0 0.0
      %247 = vmatprep.subr.mxu0 0.0
      %248 = vmatpush1.msra.mxu0 0.0
      %249 = vmatprep.subr.mxu0 0.0
      %250 = vmatpush1.msra.mxu0 0.0
      %251 = vmatprep.mubr.f32.mxu0 0.0
      %252 = vmatmul.mubr.f32.gmra.mrb[0].mxu0 %v185
      %v253 = vpop.f32.mrb[0].mxu0
      %v254 = vadd.f32 %v181, %v253
      %v255 = vpop.f32.mrb[0].mxu0
      %v256 = vadd.f32 %v181, %v255
      %257 = vdwg.mxu0
      %v258 = vmul.f32 %v254, 0.5
      %v259 = vmul.f32 %v256, 0.5
      %v260 = vmul.f32 %v254, 0.7978846
      %v261 = vmul.f32 %v256, 0.7978846
      %v262 = vmul.f32 %v254, 0.044715
      %v263 = vmul.f32 %v256, 0.044715
      %v264 = vmul.f32 %v262, %v254
      %v265 = vmul.f32 %v263, %v256
      %v266 = vadd.f32 %v264, 1.0
      %v267 = vadd.f32 %v265, 1.0
      %v268 = vmul.f32 %v260, %v266
      %v269 = vmul.f32 %v261, %v267
      %v270 = vtanh.pop %v268
      %v271 = vtanh.pop %v269
      %v272 = vadd.f32 %v270, 1.0
      %v273 = vadd.f32 %v271, 1.0
      %v274 = vmul.f32 %v258, %v272
      %v275 = vmul.f32 %v259, %v273
      %276 = vst [vmem:[%s172] sm:$0xff] %v274
      %277 = vst [vmem:[%s172 + $0x8] sm:$0xff] %v275
      %s278 = smul.u32 2, %s14
      %p279 = scmp.lt.s32.totalorder %s278, 15
      %s280 = scalar_select %p279, %s278, 15
      %s281 = smul.addr %s280, 8
      %s282 = scalar_lea.vmem %s3, %s281
      // Predicated region
      $region33: #{fwd.5} parent=31 // pred_check
        %p283 = pneg %p100
      $region34: #{fwd.5} parent=31 // pred_check_branch
        %285 = sbr.rel (%p283) target = $region36
      $region35: #{fwd.5} parent=31 // pred_region
        %s286 = smul.u32 2, %s14
      $region36: #{fwd.5} parent=31 // pred_fallthru
        _
    $region32: #{fwd.5} parent=5 // pred_fallthru
      _
    %p287 = scmp.le.s32.totalorder 2, %s9
    // Predicated region
    $region37: #{fwd.5} parent=5 // pred_check
      %p288 = pneg %p287
    $region38: #{fwd.5} parent=5 // pred_check_branch
      %290 = sbr.rel (%p288) target = $region40
    $region39: #{fwd.5} parent=5 // pred_region
      %s291 = ssub.s32 %s9, 2
      // Predicated region
      $region41: #{fwd.5} parent=39 // pred_check
        %p292 = pneg %p106
      $region42: #{fwd.5} parent=39 // pred_check_branch
        %294 = sbr.rel (%p292) target = $region44
      $region43: #{fwd.5} parent=39 // pred_region
        %s295 = smul.u32 2, %s15
        %p296 = scmp.lt.s32.totalorder %s295, 15
        %s297 = scalar_select %p296, %s295, 15
        %s298 = smul.addr %s297, 8
        %s299 = scalar_lea.vmem %s3, %s298
      $region44: #{fwd.5} parent=39 // pred_fallthru
        _
    $region40: #{fwd.5} parent=5 // pred_fallthru
      _
  $region6: #{fwd.5} parent=0 // loop_footer
    %s13 = sadd.s32 1, %s9
  $region7: #{fwd.5} parent=0 // loop_footer_branch
    %8 = sbr.rel target = $region3
  $region8: #{fwd.5} parent=0 // loop_exit
    _

// kernel: fwd.4
$region0: #{fwd.4}
  #allocation0 [shape = 'u32[]', space=smem, size = 0x4, offset = 0x4, fixed_abs, tag = 'smem constant byte address 0x4 - core index']
  #allocation1 [shape = 'u32[144,128]{1,0:T(1,128)}', space=vmem, size = 0x12000, scoped, tag = 'internal scratch']
  %s0 = inlined_call_operand.vmem [shape: f32[432,2048], index: 0, kind: input, shape index: {}]
  %s1 = inlined_call_operand.vmem [shape: f32[32,432], index: 1, kind: input, shape index: {}]
  %s2 = inlined_call_operand.vmem [shape: f32[32,1], index: 2, kind: input, shape index: {}]
  %s3 = inlined_call_operand.vmem [shape: f32[32,2048], index: 3, kind: output, shape index: {}]
  %s4 = sld [smem:[#allocation0]]
  $region87: #{fwd.4} parent=0
    _
  %s6 = ssub.s32 1, %s4
  %s7 = scalar_select 0, %s6, %s4
  $region1: #{fwd.4} parent=0
    #allocation2 [shape = 'u8[884736]{0}', space=vmem, size = 0xd8000, scoped, tag = 'input window, operand 0']
    #allocation3 [shape = 'u8[65536]{0}', space=vmem, size = 0x10000, scoped, tag = 'output window, operand 0']
    loop: start=0, step=1, limit=10
    $region2: #{fwd.4} parent=1 // loop_pre_header
      _
    $region3: #{fwd.4} parent=1 // loop_header
      %s9 = sphi 0, %s13
      %p10 = scmp.ge.s32.totalorder %s9, 10
      %s19 = sphi 0, %s21
      %s22 = sphi 0, %s19
      %s23 = sphi 0, %s22
      %s39 = sphi 0, %s23
      %s43 = sphi 0, %s43
      %s45 = sphi 0, %s43
      %s46 = sphi 0, %s45
      %s60 = sphi 0, %s46
      %s64 = sphi 0, %s64
      %s66 = sphi 0, %s64
      %s67 = sphi 0, %s66
      %s81 = sphi 0, %s67
      %s87 = sphi 0, %s89
      %s90 = sphi 0, %s87
      %s91 = sphi 0, %s90
      %s107 = sphi 0, %s91
    $region4: #{fwd.4} parent=1 // loop_header_branch
      %12 = sbr.rel (%p10) target = $region8
    $region5: #{fwd.4} parent=1 // loop_body
      %s14 = ssub.s32 %s9, 1
      %s15 = ssub.s32 %s9, 2
      %s16 = sadd.s32 %s9, 1
      %s17 = ssub.s32 %s9, %s16
      %p18 = scmp.eq.s32.totalorder %s17, 0
      %s20 = sadd.s32 %s19, 1
      %s21 = scalar_select %p18, %s19, %s20
      %p24 = pneg %p18
      %p25 = scmp.eq.s32.totalorder %s9, 7
      %p26 = por %p24, %p25
      %p27 = scmp.ne.s32.totalorder %s19, %s22
      %p28 = scmp.eq.s32.totalorder %s9, 0
      %p29 = por %p27, %p28
      %p30 = scmp.ne.s32.totalorder %s19, %s22
      %p31 = scmp.eq.s32.totalorder %s14, 7
      %p32 = por %p30, %p31
      %p33 = scmp.ne.s32.totalorder %s22, %s23
      %p34 = scmp.eq.s32.totalorder %s14, 0
      %p35 = por %p33, %p34
      %p36 = scmp.ne.s32.totalorder %s22, %s23
      %p37 = scmp.eq.s32.totalorder %s15, 7
      %p38 = por %p36, %p37
      %p40 = scmp.ne.s32.totalorder %s23, %s39
      %p41 = scmp.eq.s32.totalorder %s15, 0
      %p42 = por %p40, %p41
      %s44 = sadd.s32 %s43, 1
      %p47 = scmp.eq.s32.totalorder %s9, 7
      %p48 = scmp.ne.s32.totalorder %s43, %s45
      %p49 = scmp.eq.s32.totalorder %s9, 0
      %p50 = por %p48, %p49
      %p51 = scmp.ne.s32.totalorder %s43, %s45
      %p52 = scmp.eq.s32.totalorder %s14, 7
      %p53 = por %p51, %p52
      %p54 = scmp.ne.s32.totalorder %s45, %s46
      %p55 = scmp.eq.s32.totalorder %s14, 0
      %p56 = por %p54, %p55
      %p57 = scmp.ne.s32.totalorder %s45, %s46
      %p58 = scmp.eq.s32.totalorder %s15, 7
      %p59 = por %p57, %p58
      %p61 = scmp.ne.s32.totalorder %s46, %s60
      %p62 = scmp.eq.s32.totalorder %s15, 0
      %p63 = por %p61, %p62
      %s65 = sadd.s32 %s64, 1
      %p68 = scmp.eq.s32.totalorder %s9, 7
      %p69 = scmp.ne.s32.totalorder %s64, %s66
      %p70 = scmp.eq.s32.totalorder %s9, 0
      %p71 = por %p69, %p70
      %p72 = scmp.ne.s32.totalorder %s64, %s66
      %p73 = scmp.eq.s32.totalorder %s14, 7
      %p74 = por %p72, %p73
      %p75 = scmp.ne.s32.totalorder %s66, %s67
      %p76 = scmp.eq.s32.totalorder %s14, 0
      %p77 = por %p75, %p76
      %p78 = scmp.ne.s32.totalorder %s66, %s67
      %p79 = scmp.eq.s32.totalorder %s15, 7
      %p80 = por %p78, %p79
      %p82 = scmp.ne.s32.totalorder %s67, %s81
      %p83 = scmp.eq.s32.totalorder %s15, 0
      %p84 = por %p82, %p83
      %s85 = ssub.s32 %s9, %s16
      %p86 = scmp.eq.s32.totalorder %s85, 0
      %s88 = sadd.s32 %s87, 1
      %s89 = scalar_select %p86, %s87, %s88
      %p92 = pneg %p86
      %p93 = scmp.eq.s32.totalorder %s9, 7
      %p94 = por %p92, %p93
      %p95 = scmp.ne.s32.totalorder %s87, %s90
      %p96 = scmp.eq.s32.totalorder %s9, 0
      %p97 = por %p95, %p96
      %p98 = scmp.ne.s32.totalorder %s87, %s90
      %p99 = scmp.eq.s32.totalorder %s14, 7
      %p100 = por %p98, %p99
      %p101 = scmp.ne.s32.totalorder %s90, %s91
      %p102 = scmp.eq.s32.totalorder %s14, 0
      %p103 = por %p101, %p102
      %p104 = scmp.ne.s32.totalorder %s90, %s91
      %p105 = scmp.eq.s32.totalorder %s15, 7
      %p106 = por %p104, %p105
      %p108 = scmp.ne.s32.totalorder %s91, %s107
      %p109 = scmp.eq.s32.totalorder %s15, 0
      %p110 = por %p108, %p109
      %p111 = scmp.le.s32.totalorder 1, %s9
      %p112 = scmp.lt.s32.totalorder %s9, 9
      %p113 = pnand %p111, %p112
      %p114 = pneg %p113
      // Predicated region
      $region9: #{fwd.4} parent=5 // pred_check
        _
      $region10: #{fwd.4} parent=5 // pred_check_branch
        %116 = sbr.rel (%p113) target = $region12
      $region11: #{fwd.4} parent=5 // pred_region
        %s117 = ssub.s32 %s9, 1
        // Predicated region
        $region13: #{fwd.4} parent=11 // pred_check
          %p118 = pneg %p56
        $region14: #{fwd.4} parent=11 // pred_check_branch
          %120 = sbr.rel (%p118) target = $region16
        $region15: #{fwd.4} parent=11 // pred_region
          _
        $region16: #{fwd.4} parent=11 // pred_fallthru
          _
        // Predicated region
        $region17: #{fwd.4} parent=11 // pred_check
          %p121 = pneg %p77
        $region18: #{fwd.4} parent=11 // pred_check_branch
          %123 = sbr.rel (%p121) target = $region20
        $region19: #{fwd.4} parent=11 // pred_region
          _
        $region20: #{fwd.4} parent=11 // pred_fallthru
          _
      $region12: #{fwd.4} parent=5 // pred_fallthru
        _
      %p124 = scmp.lt.s32.totalorder %s9, 8
      // Predicated region
      $region21: #{fwd.4} parent=5 // pred_check
        %p125 = pneg %p124
      $region22: #{fwd.4} parent=5 // pred_check_branch
        %127 = sbr.rel (%p125) target = $region24
      $region23: #{fwd.4} parent=5 // pred_region
        // Predicated region
        $region25: #{fwd.4} parent=23 // pred_check
          %p128 = pneg %p29
        $region26: #{fwd.4} parent=23 // pred_check_branch
          %130 = sbr.rel (%p128) target = $region28
        $region27: #{fwd.4} parent=23 // pred_region
          %s131 = sand.u32 %s19, 1
          %s132 = sand.u32 %s19, 1
          %s133 = smul.addr %s132, 864
          %s134 = scalar_lea.vmem [#allocation2], %s133
          %s135 = smul.u32 2, %s9
          %s136 = smul.addr %s135, 8
          %s137 = scalar_lea.vmem %s0, %s136
          // Predicated region
          $region29: #{fwd.4} parent=27 // pred_check
            _
          $region30: #{fwd.4} parent=27 // pred_check_branch
            %139 = sbr.rel (0) target = $region32
          $region31: #{fwd.4} parent=27 // pred_region
            // Predicated region
            $region33: #{fwd.4} parent=31 // pred_check
              _
            $region34: #{fwd.4} parent=31 // pred_check_branch
              %141 = sbr.rel (0) target = $region36
            $region35: #{fwd.4} parent=31 // pred_region
              loop: start=0, step=1, limit=1
              $region37: #{fwd.4} parent=35 // loop_pre_header
                _
              $region38: #{fwd.4} parent=35 // loop_header
                %s143 = sphi 0, %s147
                %p144 = scmp.ge.s32.totalorder %s143, 1
                %s148 = sphi %s137, %s137
                %s149 = sphi %s134, %s134
              $region39: #{fwd.4} parent=35 // loop_header_branch
                %146 = sbr.rel (%p144) target = $region43
              $region40: #{fwd.4} parent=35 // loop_body
                %v150 = vld [vmem:[%s148] sm:$0xff]
                %151 = vst [vmem:[%s149] sm:$0xff] %v150
                %v152 = vld [vmem:[%s148 + $0x8] sm:$0xff]
                %153 = vst [vmem:[%s149 + $0x8] sm:$0xff] %v152
                %v154 = vld [vmem:[%s148 + $0x80] sm:$0xff]
                %155 = vst [vmem:[%s149 + $0x10] sm:$0xff] %v154
                %v156 = vld [vmem:[%s148 + $0x88] sm:$0xff]
                %157 = vst [vmem:[%s149 + $0x18] sm:$0xff] %v156
                %v158 = vld [vmem:[%s148 + $0x100] sm:$0xff]
                %159 = vst [vmem:[%s149 + $0x20] sm:$0xff] %v158
                %v160 = vld [vmem:[%s148 + $0x108] sm:$0xff]
                %161 = vst [vmem:[%s149 + $0x28] sm:$0xff] %v160
                %v162 = vld [vmem:[%s148 + $0x180] sm:$0xff]
                %163 = vst [vmem:[%s149 + $0x30] sm:$0xff] %v162
                %v164 = vld [vmem:[%s148 + $0x188] sm:$0xff]
                %165 = vst [vmem:[%s149 + $0x38] sm:$0xff] %v164
                %v166 = vld [vmem:[%s148 + $0x200] sm:$0xff]
                %167 = vst [vmem:[%s149 + $0x40] sm:$0xff] %v166
                %v168 = vld [vmem:[%s148 + $0x208] sm:$0xff]
                %169 = vst [vmem:[%s149 + $0x48] sm:$0xff] %v168
                %v170 = vld [vmem:[%s148 + $0x280] sm:$0xff]
                %171 = vst [vmem:[%s149 + $0x50] sm:$0xff] %v170
                %v172 = vld [vmem:[%s148 + $0x288] sm:$0xff]
                %173 = vst [vmem:[%s149 + $0x58] sm:$0xff] %v172
                %v174 = vld [vmem:[%s148 + $0x300] sm:$0xff]
                %175 = vst [vmem:[%s149 + $0x60] sm:$0xff] %v174
                %v176 = vld [vmem:[%s148 + $0x308] sm:$0xff]
                %177 = vst [vmem:[%s149 + $0x68] sm:$0xff] %v176
                %v178 = vld [vmem:[%s148 + $0x380] sm:$0xff]
                %179 = vst [vmem:[%s149 + $0x70] sm:$0xff] %v178
                %v180 = vld [vmem:[%s148 + $0x388] sm:$0xff]
                %181 = vst [vmem:[%s149 + $0x78] sm:$0xff] %v180
                %v182 = vld [vmem:[%s148 + $0x400] sm:$0xff]
                %183 = vst [vmem:[%s149 + $0x80] sm:$0xff] %v182
                %v184 = vld [vmem:[%s148 + $0x408] sm:$0xff]
                %185 = vst [vmem:[%s149 + $0x88] sm:$0xff] %v184
                %v186 = vld [vmem:[%s148 + $0x480] sm:$0xff]
                %187 = vst [vmem:[%s149 + $0x90] sm:$0xff] %v186
                %v188 = vld [vmem:[%s148 + $0x488] sm:$0xff]
                %189 = vst [vmem:[%s149 + $0x98] sm:$0xff] %v188
                %v190 = vld [vmem:[%s148 + $0x500] sm:$0xff]
                %191 = vst [vmem:[%s149 + $0xa0] sm:$0xff] %v190
                %v192 = vld [vmem:[%s148 + $0x508] sm:$0xff]
                %193 = vst [vmem:[%s149 + $0xa8] sm:$0xff] %v192
                %v194 = vld [vmem:[%s148 + $0x580] sm:$0xff]
                %195 = vst [vmem:[%s149 + $0xb0] sm:$0xff] %v194
                %v196 = vld [vmem:[%s148 + $0x588] sm:$0xff]
                %197 = vst [vmem:[%s149 + $0xb8] sm:$0xff] %v196
                %v198 = vld [vmem:[%s148 + $0x600] sm:$0xff]
                %199 = vst [vmem:[%s149 + $0xc0] sm:$0xff] %v198
                %v200 = vld [vmem:[%s148 + $0x608] sm:$0xff]
                %201 = vst [vmem:[%s149 + $0xc8] sm:$0xff] %v200
                %v202 = vld [vmem:[%s148 + $0x680] sm:$0xff]
                %203 = vst [vmem:[%s149 + $0xd0] sm:$0xff] %v202
                %v204 = vld [vmem:[%s148 + $0x688] sm:$0xff]
                %205 = vst [vmem:[%s149 + $0xd8] sm:$0xff] %v204
                %v206 = vld [vmem:[%s148 + $0x700] sm:$0xff]
                %207 = vst [vmem:[%s149 + $0xe0] sm:$0xff] %v206
                %v208 = vld [vmem:[%s148 + $0x708] sm:$0xff]
                %209 = vst [vmem:[%s149 + $0xe8] sm:$0xff] %v208
                %v210 = vld [vmem:[%s148 + $0x780] sm:$0xff]
                %211 = vst [vmem:[%s149 + $0xf0] sm:$0xff] %v210
                %v212 = vld [vmem:[%s148 + $0x788] sm:$0xff]
                %213 = vst [vmem:[%s149 + $0xf8] sm:$0xff] %v212
                %v214 = vld [vmem:[%s148 + $0x800] sm:$0xff]
                %215 = vst [vmem:[%s149 + $0x100] sm:$0xff] %v214
                %v216 = vld [vmem:[%s148 + $0x808] sm:$0xff]
                %217 = vst [vmem:[%s149 + $0x108] sm:$0xff] %v216
                %v218 = vld [vmem:[%s148 + $0x880] sm:$0xff]
                %219 = vst [vmem:[%s149 + $0x110] sm:$0xff] %v218
                %v220 = vld [vmem:[%s148 + $0x888] sm:$0xff]
                %221 = vst [vmem:[%s149 + $0x118] sm:$0xff] %v220
                %v222 = vld [vmem:[%s148 + $0x900] sm:$0xff]
                %223 = vst [vmem:[%s149 + $0x120] sm:$0xff] %v222
                %v224 = vld [vmem:[%s148 + $0x908] sm:$0xff]
                %225 = vst [vmem:[%s149 + $0x128] sm:$0xff] %v224
                %v226 = vld [vmem:[%s148 + $0x980] sm:$0xff]
                %227 = vst [vmem:[%s149 + $0x130] sm:$0xff] %v226
                %v228 = vld [vmem:[%s148 + $0x988] sm:$0xff]
                %229 = vst [vmem:[%s149 + $0x138] sm:$0xff] %v228
                %v230 = vld [vmem:[%s148 + $0xa00] sm:$0xff]
                %231 = vst [vmem:[%s149 + $0x140] sm:$0xff] %v230
                %v232 = vld [vmem:[%s148 + $0xa08] sm:$0xff]
                %233 = vst [vmem:[%s149 + $0x148] sm:$0xff] %v232
                %v234 = vld [vmem:[%s148 + $0xa80] sm:$0xff]
                %235 = vst [vmem:[%s149 + $0x150] sm:$0xff] %v234
                %v236 = vld [vmem:[%s148 + $0xa88] sm:$0xff]
                %237 = vst [vmem:[%s149 + $0x158] sm:$0xff] %v236
                %v238 = vld [vmem:[%s148 + $0xb00] sm:$0xff]
                %239 = vst [vmem:[%s149 + $0x160] sm:$0xff] %v238
                %v240 = vld [vmem:[%s148 + $0xb08] sm:$0xff]
                %241 = vst [vmem:[%s149 + $0x168] sm:$0xff] %v240
                %v242 = vld [vmem:[%s148 + $0xb80] sm:$0xff]
                %243 = vst [vmem:[%s149 + $0x170] sm:$0xff] %v242
                %v244 = vld [vmem:[%s148 + $0xb88] sm:$0xff]
                %245 = vst [vmem:[%s149 + $0x178] sm:$0xff] %v244
                %v246 = vld [vmem:[%s148 + $0xc00] sm:$0xff]
                %247 = vst [vmem:[%s149 + $0x180] sm:$0xff] %v246
                %v248 = vld [vmem:[%s148 + $0xc08] sm:$0xff]
                %249 = vst [vmem:[%s149 + $0x188] sm:$0xff] %v248
                %v250 = vld [vmem:[%s148 + $0xc80] sm:$0xff]
                %251 = vst [vmem:[%s149 + $0x190] sm:$0xff] %v250
                %v252 = vld [vmem:[%s148 + $0xc88] sm:$0xff]
                %253 = vst [vmem:[%s149 + $0x198] sm:$0xff] %v252
                %v254 = vld [vmem:[%s148 + $0xd00] sm:$0xff]
                %255 = vst [vmem:[%s149 + $0x1a0] sm:$0xff] %v254
                %v256 = vld [vmem:[%s148 + $0xd08] sm:$0xff]
                %257 = vst [vmem:[%s149 + $0x1a8] sm:$0xff] %v256
                %v258 = vld [vmem:[%s148 + $0xd80] sm:$0xff]
                %259 = vst [vmem:[%s149 + $0x1b0] sm:$0xff] %v258
                %v260 = vld [vmem:[%s148 + $0xd88] sm:$0xff]
                %261 = vst [vmem:[%s149 + $0x1b8] sm:$0xff] %v260
                %v262 = vld [vmem:[%s148 + $0xe00] sm:$0xff]
                %263 = vst [vmem:[%s149 + $0x1c0] sm:$0xff] %v262
                %v264 = vld [vmem:[%s148 + $0xe08] sm:$0xff]
                %265 = vst [vmem:[%s149 + $0x1c8] sm:$0xff] %v264
                %v266 = vld [vmem:[%s148 + $0xe80] sm:$0xff]
                %267 = vst [vmem:[%s149 + $0x1d0] sm:$0xff] %v266
                %v268 = vld [vmem:[%s148 + $0xe88] sm:$0xff]
                %269 = vst [vmem:[%s149 + $0x1d8] sm:$0xff] %v268
                %v270 = vld [vmem:[%s148 + $0xf00] sm:$0xff]
                %271 = vst [vmem:[%s149 + $0x1e0] sm:$0xff] %v270
                %v272 = vld [vmem:[%s148 + $0xf08] sm:$0xff]
                %273 = vst [vmem:[%s149 + $0x1e8] sm:$0xff] %v272
                %v274 = vld [vmem:[%s148 + $0xf80] sm:$0xff]
                %275 = vst [vmem:[%s149 + $0x1f0] sm:$0xff] %v274
                %v276 = vld [vmem:[%s148 + $0xf88] sm:$0xff]
                %277 = vst [vmem:[%s149 + $0x1f8] sm:$0xff] %v276
                %v278 = vld [vmem:[%s148 + $0x1000] sm:$0xff]
                %279 = vst [vmem:[%s149 + $0x200] sm:$0xff] %v278
                %v280 = vld [vmem:[%s148 + $0x1008] sm:$0xff]
                %281 = vst [vmem:[%s149 + $0x208] sm:$0xff] %v280
                %v282 = vld [vmem:[%s148 + $0x1080] sm:$0xff]
                %283 = vst [vmem:[%s149 + $0x210] sm:$0xff] %v282
                %v284 = vld [vmem:[%s148 + $0x1088] sm:$0xff]
                %285 = vst [vmem:[%s149 + $0x218] sm:$0xff] %v284
                %v286 = vld [vmem:[%s148 + $0x1100] sm:$0xff]
                %287 = vst [vmem:[%s149 + $0x220] sm:$0xff] %v286
                %v288 = vld [vmem:[%s148 + $0x1108] sm:$0xff]
                %289 = vst [vmem:[%s149 + $0x228] sm:$0xff] %v288
                %v290 = vld [vmem:[%s148 + $0x1180] sm:$0xff]
                %291 = vst [vmem:[%s149 + $0x230] sm:$0xff] %v290
                %v292 = vld [vmem:[%s148 + $0x1188] sm:$0xff]
                %293 = vst [vmem:[%s149 + $0x238] sm:$0xff] %v292
                %v294 = vld [vmem:[%s148 + $0x1200] sm:$0xff]
                %295 = vst [vmem:[%s149 + $0x240] sm:$0xff] %v294
                %v296 = vld [vmem:[%s148 + $0x1208] sm:$0xff]
                %297 = vst [vmem:[%s149 + $0x248] sm:$0xff] %v296
                %v298 = vld [vmem:[%s148 + $0x1280] sm:$0xff]
                %299 = vst [vmem:[%s149 + $0x250] sm:$0xff] %v298
                %v300 = vld [vmem:[%s148 + $0x1288] sm:$0xff]
                %301 = vst [vmem:[%s149 + $0x258] sm:$0xff] %v300
                %v302 = vld [vmem:[%s148 + $0x1300] sm:$0xff]
                %303 = vst [vmem:[%s149 + $0x260] sm:$0xff] %v302
                %v304 = vld [vmem:[%s148 + $0x1308] sm:$0xff]
                %305 = vst [vmem:[%s149 + $0x268] sm:$0xff] %v304
                %v306 = vld [vmem:[%s148 + $0x1380] sm:$0xff]
                %307 = vst [vmem:[%s149 + $0x270] sm:$0xff] %v306
                %v308 = vld [vmem:[%s148 + $0x1388] sm:$0xff]
                %309 = vst [vmem:[%s149 + $0x278] sm:$0xff] %v308
                %v310 = vld [vmem:[%s148 + $0x1400] sm:$0xff]
                %311 = vst [vmem:[%s149 + $0x280] sm:$0xff] %v310
                %v312 = vld [vmem:[%s148 + $0x1408] sm:$0xff]
                %313 = vst [vmem:[%s149 + $0x288] sm:$0xff] %v312
                %v314 = vld [vmem:[%s148 + $0x1480] sm:$0xff]
                %315 = vst [vmem:[%s149 + $0x290] sm:$0xff] %v314
                %v316 = vld [vmem:[%s148 + $0x1488] sm:$0xff]
                %317 = vst [vmem:[%s149 + $0x298] sm:$0xff] %v316
                %v318 = vld [vmem:[%s148 + $0x1500] sm:$0xff]
                %319 = vst [vmem:[%s149 + $0x2a0] sm:$0xff] %v318
                %v320 = vld [vmem:[%s148 + $0x1508] sm:$0xff]
                %321 = vst [vmem:[%s149 + $0x2a8] sm:$0xff] %v320
                %v322 = vld [vmem:[%s148 + $0x1580] sm:$0xff]
                %323 = vst [vmem:[%s149 + $0x2b0] sm:$0xff] %v322
                %v324 = vld [vmem:[%s148 + $0x1588] sm:$0xff]
                %325 = vst [vmem:[%s149 + $0x2b8] sm:$0xff] %v324
                %v326 = vld [vmem:[%s148 + $0x1600] sm:$0xff]
                %327 = vst [vmem:[%s149 + $0x2c0] sm:$0xff] %v326
                %v328 = vld [vmem:[%s148 + $0x1608] sm:$0xff]
                %329 = vst [vmem:[%s149 + $0x2c8] sm:$0xff] %v328
                %v330 = vld [vmem:[%s148 + $0x1680] sm:$0xff]
                %331 = vst [vmem:[%s149 + $0x2d0] sm:$0xff] %v330
                %v332 = vld [vmem:[%s148 + $0x1688] sm:$0xff]
                %333 = vst [vmem:[%s149 + $0x2d8] sm:$0xff] %v332
                %v334 = vld [vmem:[%s148 + $0x1700] sm:$0xff]
                %335 = vst [vmem:[%s149 + $0x2e0] sm:$0xff] %v334
                %v336 = vld [vmem:[%s148 + $0x1708] sm:$0xff]
                %337 = vst [vmem:[%s149 + $0x2e8] sm:$0xff] %v336
                %v338 = vld [vmem:[%s148 + $0x1780] sm:$0xff]
                %339 = vst [vmem:[%s149 + $0x2f0] sm:$0xff] %v338
                %v340 = vld [vmem:[%s148 + $0x1788] sm:$0xff]
                %341 = vst [vmem:[%s149 + $0x2f8] sm:$0xff] %v340
                %v342 = vld [vmem:[%s148 + $0x1800] sm:$0xff]
                %343 = vst [vmem:[%s149 + $0x300] sm:$0xff] %v342
                %v344 = vld [vmem:[%s148 + $0x1808] sm:$0xff]
                %345 = vst [vmem:[%s149 + $0x308] sm:$0xff] %v344
                %v346 = vld [vmem:[%s148 + $0x1880] sm:$0xff]
                %347 = vst [vmem:[%s149 + $0x310] sm:$0xff] %v346
                %v348 = vld [vmem:[%s148 + $0x1888] sm:$0xff]
                %349 = vst [vmem:[%s149 + $0x318] sm:$0xff] %v348
                %v350 = vld [vmem:[%s148 + $0x1900] sm:$0xff]
                %351 = vst [vmem:[%s149 + $0x320] sm:$0xff] %v350
                %v352 = vld [vmem:[%s148 + $0x1908] sm:$0xff]
                %353 = vst [vmem:[%s149 + $0x328] sm:$0xff] %v352
                %v354 = vld [vmem:[%s148 + $0x1980] sm:$0xff]
                %355 = vst [vmem:[%s149 + $0x330] sm:$0xff] %v354
                %v356 = vld [vmem:[%s148 + $0x1988] sm:$0xff]
                %357 = vst [vmem:[%s149 + $0x338] sm:$0xff] %v356
                %v358 = vld [vmem:[%s148 + $0x1a00] sm:$0xff]
                %359 = vst [vmem:[%s149 + $0x340] sm:$0xff] %v358
                %v360 = vld [vmem:[%s148 + $0x1a08] sm:$0xff]
                %361 = vst [vmem:[%s149 + $0x348] sm:$0xff] %v360
                %v362 = vld [vmem:[%s148 + $0x1a80] sm:$0xff]
                %363 = vst [vmem:[%s149 + $0x350] sm:$0xff] %v362
                %v364 = vld [vmem:[%s148 + $0x1a88] sm:$0xff]
                %365 = vst [vmem:[%s149 + $0x358] sm:$0xff] %v364
              $region41: #{fwd.4} parent=35 // loop_footer
                %s147 = sadd.s32 1, %s143
              $region42: #{fwd.4} parent=35 // loop_footer_branch
                %142 = sbr.rel target = $region38
              $region43: #{fwd.4} parent=35 // loop_exit
                _
            $region36: #{fwd.4} parent=31 // pred_fallthru
              _
            // Predicated region
            $region44: #{fwd.4} parent=31 // pred_check
              _
            $region45: #{fwd.4} parent=31 // pred_check_branch
              %367 = sbr.rel target = $region47
            $region46: #{fwd.4} parent=31 // pred_region
              _
            $region47: #{fwd.4} parent=31 // pred_fallthru
              _
          $region32: #{fwd.4} parent=27 // pred_fallthru
            _
          %368 = vnop
        $region28: #{fwd.4} parent=23 // pred_fallthru
          _
      $region24: #{fwd.4} parent=5 // pred_fallthru
        _
      %p369 = scmp.le.s32.totalorder 1, %s9
      %p370 = scmp.lt.s32.totalorder %s9, 9
      %p371 = pnand %p369, %p370
      %p372 = pneg %p371
      // Predicated region
      $region48: #{fwd.4} parent=5 // pred_check
        _
      $region49: #{fwd.4} parent=5 // pred_check_branch
        %374 = sbr.rel (%p371) target = $region51
      $region50: #{fwd.4} parent=5 // pred_region
        %s375 = ssub.s32 %s9, 1
        %s376 = sand.u32 %s22, 1
        %s377 = sand.u32 %s22, 1
        %s378 = smul.addr %s377, 864
        %s379 = scalar_lea.vmem [#allocation2], %s378
        // Predicated region
        $region52: #{fwd.4} parent=50 // pred_check
          %p380 = pneg %p35
        $region53: #{fwd.4} parent=50 // pred_check_branch
          %382 = sbr.rel (%p380) target = $region55
        $region54: #{fwd.4} parent=50 // pred_region
          _
        $region55: #{fwd.4} parent=50 // pred_fallthru
          _
        %s383 = sand.u32 %s22, 1
        %s384 = sand.u32 %s22, 1
        %s385 = smul.addr %s384, 864
        %s386 = scalar_lea.vmem [#allocation2], %s385
        %p387 = pneg %p35
        %p388 = pneg %p32
        %p389 = pneg %p56
        %p390 = pneg %p53
        %p391 = pneg %p77
        %p392 = pneg %p74
        %p393 = pneg %p103
        %p394 = pneg %p100
        %s395 = sand.u32 %s90, 1
        %s396 = sand.u32 %s90, 1
        %s397 = smul.addr %s396, 64
        %s398 = scalar_lea.vmem [#allocation3], %s397
        %s399 = smul.u32 2, %s14
        %s400 = smul.u32 2, %s14
        %v401 = vld [vmem:[%s1] sm:$0xff]
        %v402 = vld [vmem:[%s1 + $0x8] sm:$0xff]
        %v403 = vld [vmem:[%s1 + $0x10] sm:$0xff]
        %v404 = vld [vmem:[%s1 + $0x18] sm:$0xff]
        %v405 = vld [vmem:[%s1 + $0x20] sm:$0xff]
        %v406 = vld [vmem:[%s1 + $0x28] sm:$0xff]
        %v407 = vld [vmem:[%s1 + $0x30] sm:$0xff]
        %v408 = vld [vmem:[%s1 + $0x38] sm:$0xff]
        %v409 = vld [vmem:[%s1 + $0x40] sm:$0xff]
        %v410 = vld [vmem:[%s1 + $0x48] sm:$0xff]
        %v411 = vld [vmem:[%s1 + $0x50] sm:$0xff]
        %v412 = vld [vmem:[%s1 + $0x58] sm:$0xff]
        %v413 = vld [vmem:[%s1 + $0x60] sm:$0xff]
        %v414 = vld [vmem:[%s1 + $0x68] sm:$0xff]
        %v415 = vld [vmem:[%s1 + $0x70] sm:$0xff]
        %v416 = vld [vmem:[%s1 + $0x78] sm:$0xff]
        %v417 = vld [vmem:[%s379] sm:$0xff]
        %v418 = vld [vmem:[%s379 + $0x8] sm:$0xff]
        %v419 = vld [vmem:[%s379 + $0x10] sm:$0xff]
        %v420 = vld [vmem:[%s379 + $0x18] sm:$0xff]
        %v421 = vld [vmem:[%s379 + $0x20] sm:$0xff]
        %v422 = vld [vmem:[%s379 + $0x28] sm:$0xff]
        %v423 = vld [vmem:[%s379 + $0x30] sm:$0xff]
        %v424 = vld [vmem:[%s379 + $0x38] sm:$0xff]
        %v425 = vld [vmem:[%s379 + $0x40] sm:$0xff]
        %v426 = vld [vmem:[%s379 + $0x48] sm:$0xff]
        %v427 = vld [vmem:[%s379 + $0x50] sm:$0xff]
        %v428 = vld [vmem:[%s379 + $0x58] sm:$0xff]
        %v429 = vld [vmem:[%s379 + $0x60] sm:$0xff]
        %v430 = vld [vmem:[%s379 + $0x68] sm:$0xff]
        %v431 = vld [vmem:[%s379 + $0x70] sm:$0xff]
        %v432 = vld [vmem:[%s379 + $0x78] sm:$0xff]
        %v433 = vld [vmem:[%s379 + $0x80] sm:$0xff]
        %v434 = vld [vmem:[%s379 + $0x88] sm:$0xff]
        %v435 = vld [vmem:[%s379 + $0x90] sm:$0xff]
        %v436 = vld [vmem:[%s379 + $0x98] sm:$0xff]
        %v437 = vld [vmem:[%s379 + $0xa0] sm:$0xff]
        %v438 = vld [vmem:[%s379 + $0xa8] sm:$0xff]
        %v439 = vld [vmem:[%s379 + $0xb0] sm:$0xff]
        %v440 = vld [vmem:[%s379 + $0xb8] sm:$0xff]
        %v441 = vld [vmem:[%s379 + $0xc0] sm:$0xff]
        %v442 = vld [vmem:[%s379 + $0xc8] sm:$0xff]
        %v443 = vld [vmem:[%s379 + $0xd0] sm:$0xff]
        %v444 = vld [vmem:[%s379 + $0xd8] sm:$0xff]
        %v445 = vld [vmem:[%s379 + $0xe0] sm:$0xff]
        %v446 = vld [vmem:[%s379 + $0xe8] sm:$0xff]
        %v447 = vld [vmem:[%s379 + $0xf0] sm:$0xff]
        %v448 = vld [vmem:[%s379 + $0xf8] sm:$0xff]
        %v449 = vld [vmem:[%s379 + $0x100] sm:$0xff]
        %v450 = vld [vmem:[%s379 + $0x108] sm:$0xff]
        %v451 = vld [vmem:[%s379 + $0x110] sm:$0xff]
        %v452 = vld [vmem:[%s379 + $0x118] sm:$0xff]
        %v453 = vld [vmem:[%s379 + $0x120] sm:$0xff]
        %v454 = vld [vmem:[%s379 + $0x128] sm:$0xff]
        %v455 = vld [vmem:[%s379 + $0x130] sm:$0xff]
        %v456 = vld [vmem:[%s379 + $0x138] sm:$0xff]
        %v457 = vld [vmem:[%s379 + $0x140] sm:$0xff]
        %v458 = vld [vmem:[%s379 + $0x148] sm:$0xff]
        %v459 = vld [vmem:[%s379 + $0x150] sm:$0xff]
        %v460 = vld [vmem:[%s379 + $0x158] sm:$0xff]
        %v461 = vld [vmem:[%s379 + $0x160] sm:$0xff]
        %v462 = vld [vmem:[%s379 + $0x168] sm:$0xff]
        %v463 = vld [vmem:[%s379 + $0x170] sm:$0xff]
        %v464 = vld [vmem:[%s379 + $0x178] sm:$0xff]
        %v465 = vld [vmem:[%s379 + $0x180] sm:$0xff]
        %v466 = vld [vmem:[%s379 + $0x188] sm:$0xff]
        %v467 = vld [vmem:[%s379 + $0x190] sm:$0xff]
        %v468 = vld [vmem:[%s379 + $0x198] sm:$0xff]
        %v469 = vld [vmem:[%s379 + $0x1a0] sm:$0xff]
        %v470 = vld [vmem:[%s379 + $0x1a8] sm:$0xff]
        %v471 = vld [vmem:[%s379 + $0x1b0] sm:$0xff]
        %v472 = vld [vmem:[%s379 + $0x1b8] sm:$0xff]
        %v473 = vld [vmem:[%s379 + $0x1c0] sm:$0xff]
        %v474 = vld [vmem:[%s379 + $0x1c8] sm:$0xff]
        %v475 = vld [vmem:[%s379 + $0x1d0] sm:$0xff]
        %v476 = vld [vmem:[%s379 + $0x1d8] sm:$0xff]
        %v477 = vld [vmem:[%s379 + $0x1e0] sm:$0xff]
        %v478 = vld [vmem:[%s379 + $0x1e8] sm:$0xff]
        %v479 = vld [vmem:[%s379 + $0x1f0] sm:$0xff]
        %v480 = vld [vmem:[%s379 + $0x1f8] sm:$0xff]
        %v481 = vld [vmem:[%s379 + $0x200] sm:$0xff]
        %v482 = vld [vmem:[%s379 + $0x208] sm:$0xff]
        %v483 = vld [vmem:[%s379 + $0x210] sm:$0xff]
        %v484 = vld [vmem:[%s379 + $0x218] sm:$0xff]
        %v485 = vld [vmem:[%s379 + $0x220] sm:$0xff]
        %v486 = vld [vmem:[%s379 + $0x228] sm:$0xff]
        %v487 = vld [vmem:[%s379 + $0x230] sm:$0xff]
        %v488 = vld [vmem:[%s379 + $0x238] sm:$0xff]
        %v489 = vld [vmem:[%s379 + $0x240] sm:$0xff]
        %v490 = vld [vmem:[%s379 + $0x248] sm:$0xff]
        %v491 = vld [vmem:[%s379 + $0x250] sm:$0xff]
        %v492 = vld [vmem:[%s379 + $0x258] sm:$0xff]
        %v493 = vld [vmem:[%s379 + $0x260] sm:$0xff]
        %v494 = vld [vmem:[%s379 + $0x268] sm:$0xff]
        %v495 = vld [vmem:[%s379 + $0x270] sm:$0xff]
        %v496 = vld [vmem:[%s379 + $0x278] sm:$0xff]
        %v497 = vld [vmem:[%s379 + $0x280] sm:$0xff]
        %v498 = vld [vmem:[%s379 + $0x288] sm:$0xff]
        %v499 = vld [vmem:[%s379 + $0x290] sm:$0xff]
        %v500 = vld [vmem:[%s379 + $0x298] sm:$0xff]
        %v501 = vld [vmem:[%s379 + $0x2a0] sm:$0xff]
        %v502 = vld [vmem:[%s379 + $0x2a8] sm:$0xff]
        %v503 = vld [vmem:[%s379 + $0x2b0] sm:$0xff]
        %v504 = vld [vmem:[%s379 + $0x2b8] sm:$0xff]
        %v505 = vld [vmem:[%s379 + $0x2c0] sm:$0xff]
        %v506 = vld [vmem:[%s379 + $0x2c8] sm:$0xff]
        %v507 = vld [vmem:[%s379 + $0x2d0] sm:$0xff]
        %v508 = vld [vmem:[%s379 + $0x2d8] sm:$0xff]
        %v509 = vld [vmem:[%s379 + $0x2e0] sm:$0xff]
        %v510 = vld [vmem:[%s379 + $0x2e8] sm:$0xff]
        %v511 = vld [vmem:[%s379 + $0x2f0] sm:$0xff]
        %v512 = vld [vmem:[%s379 + $0x2f8] sm:$0xff]
        %v513 = vld [vmem:[%s379 + $0x300] sm:$0xff]
        %v514 = vld [vmem:[%s379 + $0x308] sm:$0xff]
        %v515 = vld [vmem:[%s379 + $0x310] sm:$0xff]
        %v516 = vld [vmem:[%s379 + $0x318] sm:$0xff]
        %v517 = vld [vmem:[%s379 + $0x320] sm:$0xff]
        %v518 = vld [vmem:[%s379 + $0x328] sm:$0xff]
        %v519 = vld [vmem:[%s379 + $0x330] sm:$0xff]
        %v520 = vld [vmem:[%s379 + $0x338] sm:$0xff]
        %v521 = vld [vmem:[%s379 + $0x340] sm:$0xff]
        %v522 = vld [vmem:[%s379 + $0x348] sm:$0xff]
        %v523 = vld [vmem:[%s379 + $0x350] sm:$0xff]
        %v524 = vld [vmem:[%s379 + $0x358] sm:$0xff]
        %v525 = vld [vmem:[%s2] sm:$0xff]
        %v526 = vld [vmem:[%s2 + $0x8] sm:$0xff]
        %v527 = vld [vmem:[%s2 + $0x10] sm:$0xff]
        %v528 = vld [vmem:[%s2 + $0x18] sm:$0xff]
        %530 = vset.pattern.permute.xlu0 0
        %531 = vperm.xlu0 %530, %v525
        %v532 = vpop.permute.xlu0 %531
        %535 = vset.pattern.permute.xlu0 0
        %536 = vperm.xlu0 %535, %v526
        %v537 = vpop.permute.xlu0 %536
        %540 = vset.pattern.permute.xlu0 0
        %541 = vperm.xlu0 %540, %v527
        %v542 = vpop.permute.xlu0 %541
        %545 = vset.pattern.permute.xlu0 0
        %546 = vperm.xlu0 %545, %v528
        %v547 = vpop.permute.xlu0 %546
        %vm549 = vcmask 392192
        %v551 = vsel %vm549, %v404, 0
        %v554 = vsel %vm549, %v408, 0
        %v557 = vsel %vm549, %v412, 0
        %v560 = vsel %vm549, %v416, 0
        %562 = vmatprep.subr.mxu0 %v418
        %563 = vmatpush1.msra.mxu0 %v417
        %564 = vmatprep.subr.mxu0 %v420
        %565 = vmatpush1.msra.mxu0 %v419
        %566 = vmatprep.subr.mxu0 %v422
        %567 = vmatpush1.msra.mxu0 %v421
        %568 = vmatprep.subr.mxu0 %v424
        %569 = vmatpush1.msra.mxu0 %v423
        %570 = vmatprep.subr.mxu0 %v426
        %571 = vmatpush1.msra.mxu0 %v425
        %572 = vmatprep.subr.mxu0 %v428
        %573 = vmatpush1.msra.mxu0 %v427
        %574 = vmatprep.subr.mxu0 %v430
        %575 = vmatpush1.msra.mxu0 %v429
        %576 = vmatprep.subr.mxu0 %v432
        %577 = vmatpush1.msra.mxu0 %v431
        %578 = vmatprep.subr.mxu0 %v434
        %579 = vmatpush1.msra.mxu0 %v433
        %580 = vmatprep.subr.mxu0 %v436
        %581 = vmatpush1.msra.mxu0 %v435
        %582 = vmatprep.subr.mxu0 %v438
        %583 = vmatpush1.msra.mxu0 %v437
        %584 = vmatprep.subr.mxu0 %v440
        %585 = vmatpush1.msra.mxu0 %v439
        %586 = vmatprep.subr.mxu0 %v442
        %587 = vmatpush1.msra.mxu0 %v441
        %588 = vmatprep.subr.mxu0 %v444
        %589 = vmatpush1.msra.mxu0 %v443
        %590 = vmatprep.subr.mxu0 %v446
        %591 = vmatpush1.msra.mxu0 %v445
        %592 = vmatprep.subr.mxu0 %v448
        %593 = vmatpush1.msra.mxu0 %v447
        %594 = vmatprep.subr.mxu0 %v450
        %595 = vmatpush1.msra.mxu0 %v449
        %596 = vmatprep.subr.mxu0 %v452
        %597 = vmatpush1.msra.mxu0 %v451
        %598 = vmatprep.subr.mxu0 %v454
        %599 = vmatpush1.msra.mxu0 %v453
        %600 = vmatprep.subr.mxu0 %v456
        %601 = vmatpush1.msra.mxu0 %v455
        %602 = vmatprep.subr.mxu0 %v458
        %603 = vmatpush1.msra.mxu0 %v457
        %604 = vmatprep.subr.mxu0 %v460
        %605 = vmatpush1.msra.mxu0 %v459
        %606 = vmatprep.subr.mxu0 %v462
        %607 = vmatpush1.msra.mxu0 %v461
        %608 = vmatprep.subr.mxu0 %v464
        %609 = vmatpush1.msra.mxu0 %v463
        %610 = vmatprep.subr.mxu0 %v466
        %611 = vmatpush1.msra.mxu0 %v465
        %612 = vmatprep.subr.mxu0 %v468
        %613 = vmatpush1.msra.mxu0 %v467
        %614 = vmatprep.subr.mxu0 %v470
        %615 = vmatpush1.msra.mxu0 %v469
        %616 = vmatprep.subr.mxu0 %v472
        %617 = vmatpush1.msra.mxu0 %v471
        %618 = vmatprep.subr.mxu0 %v474
        %619 = vmatpush1.msra.mxu0 %v473
        %620 = vmatprep.subr.mxu0 %v476
        %621 = vmatpush1.msra.mxu0 %v475
        %622 = vmatprep.subr.mxu0 %v478
        %623 = vmatpush1.msra.mxu0 %v477
        %624 = vmatprep.subr.mxu0 %v480
        %625 = vmatpush1.msra.mxu0 %v479
        %626 = vmatprep.mubr.f32.mxu0 %v402
        %627 = vmatmul.mubr.f32.gmra.mrb[0].mxu0 %v401
        %v628 = vpop.f32.mrb[0].mxu0
        %v629 = vadd.f32 %v532, %v628
        %v630 = vpop.f32.mrb[0].mxu0
        %v631 = vadd.f32 %v532, %v630
        %632 = vmatprep.mubr.f32.mxu0 %v406
        %633 = vmatmul.mubr.f32.gmra.mrb[0].mxu0 %v405
        %v634 = vpop.f32.mrb[0].mxu0
        %v635 = vadd.f32 %v537, %v634
        %v636 = vpop.f32.mrb[0].mxu0
        %v637 = vadd.f32 %v537, %v636
        %638 = vmatprep.mubr.f32.mxu0 %v410
        %639 = vmatmul.mubr.f32.gmra.mrb[0].mxu0 %v409
        %v640 = vpop.f32.mrb[0].mxu0
        %v641 = vadd.f32 %v542, %v640
        %v642 = vpop.f32.mrb[0].mxu0
        %v643 = vadd.f32 %v542, %v642
        %644 = vmatprep.mubr.f32.mxu0 %v414
        %645 = vmatmul.mubr.f32.gmra.mrb[0].mxu0 %v413
        %v646 = vpop.f32.mrb[0].mxu0
        %v647 = vadd.f32 %v547, %v646
        %v648 = vpop.f32.mrb[0].mxu0
        %v649 = vadd.f32 %v547, %v648
        %650 = vdwg.mxu0
        %651 = vmatprep.subr.mxu0 %v482
        %652 = vmatpush1.msra.mxu0 %v481
        %653 = vmatprep.subr.mxu0 %v484
        %654 = vmatpush1.msra.mxu0 %v483
        %655 = vmatprep.subr.mxu0 %v486
        %656 = vmatpush1.msra.mxu0 %v485
        %657 = vmatprep.subr.mxu0 %v488
        %658 = vmatpush1.msra.mxu0 %v487
        %659 = vmatprep.subr.mxu0 %v490
        %660 = vmatpush1.msra.mxu0 %v489
        %661 = vmatprep.subr.mxu0 %v492
        %662 = vmatpush1.msra.mxu0 %v491
        %663 = vmatprep.subr.mxu0 %v494
        %664 = vmatpush1.msra.mxu0 %v493
        %665 = vmatprep.subr.mxu0 %v496
        %666 = vmatpush1.msra.mxu0 %v495
        %667 = vmatprep.subr.mxu0 %v498
        %668 = vmatpush1.msra.mxu0 %v497
        %669 = vmatprep.subr.mxu0 %v500
        %670 = vmatpush1.msra.mxu0 %v499
        %671 = vmatprep.subr.mxu0 %v502
        %672 = vmatpush1.msra.mxu0 %v501
        %673 = vmatprep.subr.mxu0 %v504
        %674 = vmatpush1.msra.mxu0 %v503
        %675 = vmatprep.subr.mxu0 %v506
        %676 = vmatpush1.msra.mxu0 %v505
        %677 = vmatprep.subr.mxu0 %v508
        %678 = vmatpush1.msra.mxu0 %v507
        %679 = vmatprep.subr.mxu0 %v510
        %680 = vmatpush1.msra.mxu0 %v509
        %681 = vmatprep.subr.mxu0 %v512
        %682 = vmatpush1.msra.mxu0 %v511
        %683 = vmatprep.subr.mxu0 %v514
        %684 = vmatpush1.msra.mxu0 %v513
        %685 = vmatprep.subr.mxu0 %v516
        %686 = vmatpush1.msra.mxu0 %v515
        %687 = vmatprep.subr.mxu0 %v518
        %688 = vmatpush1.msra.mxu0 %v517
        %689 = vmatprep.subr.mxu0 %v520
        %690 = vmatpush1.msra.mxu0 %v519
        %691 = vmatprep.subr.mxu0 %v522
        %692 = vmatpush1.msra.mxu0 %v521
        %693 = vmatprep.subr.mxu0 %v524
        %694 = vmatpush1.msra.mxu0 %v523
        %695 = vmatprep.subr.mxu0 0.0
        %696 = vmatpush1.msra.mxu0 0.0
        %697 = vmatprep.subr.mxu0 0.0
        %698 = vmatpush1.msra.mxu0 0.0
        %699 = vmatprep.subr.mxu0 0.0
        %700 = vmatpush1.msra.mxu0 0.0
        %701 = vmatprep.subr.mxu0 0.0
        %702 = vmatpush1.msra.mxu0 0.0
        %703 = vmatprep.subr.mxu0 0.0
        %704 = vmatpush1.msra.mxu0 0.0
        %705 = vmatprep.subr.mxu0 0.0
        %706 = vmatpush1.msra.mxu0 0.0
        %707 = vmatprep.subr.mxu0 0.0
        %708 = vmatpush1.msra.mxu0 0.0
        %709 = vmatprep.subr.mxu0 0.0
        %710 = vmatpush1.msra.mxu0 0.0
        %711 = vmatprep.subr.mxu0 0.0
        %712 = vmatpush1.msra.mxu0 0.0
        %713 = vmatprep.subr.mxu0 0.0
        %714 = vmatpush1.msra.mxu0 0.0
        %715 = vmatprep.mubr.f32.mxu0 %v551
        %716 = vmatmul.mubr.f32.gmra.mrb[0].mxu0 %v403
        %v717 = vpop.f32.mrb[0].mxu0
        %v718 = vadd.f32 %v629, %v717
        %v719 = vpop.f32.mrb[0].mxu0
        %v720 = vadd.f32 %v631, %v719
        %721 = vmatprep.mubr.f32.mxu0 %v554
        %722 = vmatmul.mubr.f32.gmra.mrb[0].mxu0 %v407
        %v723 = vpop.f32.mrb[0].mxu0
        %v724 = vadd.f32 %v635, %v723
        %v725 = vpop.f32.mrb[0].mxu0
        %v726 = vadd.f32 %v637, %v725
        %727 = vmatprep.mubr.f32.mxu0 %v557
        %728 = vmatmul.mubr.f32.gmra.mrb[0].mxu0 %v411
        %v729 = vpop.f32.mrb[0].mxu0
        %v730 = vadd.f32 %v641, %v729
        %v731 = vpop.f32.mrb[0].mxu0
        %v732 = vadd.f32 %v643, %v731
        %733 = vmatprep.mubr.f32.mxu0 %v560
        %734 = vmatmul.mubr.f32.gmra.mrb[0].mxu0 %v415
        %v735 = vpop.f32.mrb[0].mxu0
        %v736 = vadd.f32 %v647, %v735
        %v737 = vpop.f32.mrb[0].mxu0
        %v738 = vadd.f32 %v649, %v737
        %739 = vdwg.mxu0
        %v740 = vmul.f32 %v718, 0.5
        %v741 = vmul.f32 %v720, 0.5
        %v742 = vmul.f32 %v724, 0.5
        %v743 = vmul.f32 %v726, 0.5
        %v744 = vmul.f32 %v730, 0.5
        %v745 = vmul.f32 %v732, 0.5
        %v746 = vmul.f32 %v736, 0.5
        %v747 = vmul.f32 %v738, 0.5
        %v748 = vmul.f32 %v718, 0.7978846
        %v749 = vmul.f32 %v720, 0.7978846
        %v750 = vmul.f32 %v724, 0.7978846
        %v751 = vmul.f32 %v726, 0.7978846
        %v752 = vmul.f32 %v730, 0.7978846
        %v753 = vmul.f32 %v732, 0.7978846
        %v754 = vmul.f32 %v736, 0.7978846
        %v755 = vmul.f32 %v738, 0.7978846
        %v756 = vmul.f32 %v718, 0.044715
        %v757 = vmul.f32 %v720, 0.044715
        %v758 = vmul.f32 %v724, 0.044715
        %v759 = vmul.f32 %v726, 0.044715
        %v760 = vmul.f32 %v730, 0.044715
        %v761 = vmul.f32 %v732, 0.044715
        %v762 = vmul.f32 %v736, 0.044715
        %v763 = vmul.f32 %v738, 0.044715
        %v764 = vmul.f32 %v756, %v718
        %v765 = vmul.f32 %v757, %v720
        %v766 = vmul.f32 %v758, %v724
        %v767 = vmul.f32 %v759, %v726
        %v768 = vmul.f32 %v760, %v730
        %v769 = vmul.f32 %v761, %v732
        %v770 = vmul.f32 %v762, %v736
        %v771 = vmul.f32 %v763, %v738
        %v772 = vadd.f32 %v764, 1.0
        %v773 = vadd.f32 %v765, 1.0
        %v774 = vadd.f32 %v766, 1.0
        %v775 = vadd.f32 %v767, 1.0
        %v776 = vadd.f32 %v768, 1.0
        %v777 = vadd.f32 %v769, 1.0
        %v778 = vadd.f32 %v770, 1.0
        %v779 = vadd.f32 %v771, 1.0
        %v780 = vmul.f32 %v748, %v772
        %v781 = vmul.f32 %v749, %v773
        %v782 = vmul.f32 %v750, %v774
        %v783 = vmul.f32 %v751, %v775
        %v784 = vmul.f32 %v752, %v776
        %v785 = vmul.f32 %v753, %v777
        %v786 = vmul.f32 %v754, %v778
        %v787 = vmul.f32 %v755, %v779
        %v788 = vtanh.pop %v780
        %v789 = vtanh.pop %v781
        %v790 = vtanh.pop %v782
        %v791 = vtanh.pop %v783
        %v792 = vtanh.pop %v784
        %v793 = vtanh.pop %v785
        %v794 = vtanh.pop %v786
        %v795 = vtanh.pop %v787
        %v796 = vadd.f32 %v788, 1.0
        %v797 = vadd.f32 %v789, 1.0
        %v798 = vadd.f32 %v790, 1.0
        %v799 = vadd.f32 %v791, 1.0
        %v800 = vadd.f32 %v792, 1.0
        %v801 = vadd.f32 %v793, 1.0
        %v802 = vadd.f32 %v794, 1.0
        %v803 = vadd.f32 %v795, 1.0
        %v804 = vmul.f32 %v740, %v796
        %v805 = vmul.f32 %v741, %v797
        %v806 = vmul.f32 %v742, %v798
        %v807 = vmul.f32 %v743, %v799
        %v808 = vmul.f32 %v744, %v800
        %v809 = vmul.f32 %v745, %v801
        %v810 = vmul.f32 %v746, %v802
        %v811 = vmul.f32 %v747, %v803
        %812 = vst [vmem:[%s398] sm:$0xff] %v804
        %813 = vst [vmem:[%s398 + $0x8] sm:$0xff] %v805
        %814 = vst [vmem:[%s398 + $0x10] sm:$0xff] %v806
        %815 = vst [vmem:[%s398 + $0x18] sm:$0xff] %v807
        %816 = vst [vmem:[%s398 + $0x20] sm:$0xff] %v808
        %817 = vst [vmem:[%s398 + $0x28] sm:$0xff] %v809
        %818 = vst [vmem:[%s398 + $0x30] sm:$0xff] %v810
        %819 = vst [vmem:[%s398 + $0x38] sm:$0xff] %v811
        %s820 = sand.u32 %s90, 1
        %s821 = sand.u32 %s90, 1
        %s822 = smul.addr %s821, 64
        %s823 = scalar_lea.vmem [#allocation3], %s822
        // Predicated region
        $region56: #{fwd.4} parent=50 // pred_check
          %p824 = pneg %p100
        $region57: #{fwd.4} parent=50 // pred_check_branch
          %826 = sbr.rel (%p824) target = $region59
        $region58: #{fwd.4} parent=50 // pred_region
          %s827 = smul.u32 2, %s14
          %s828 = smul.addr %s827, 8
          %s829 = scalar_lea.vmem %s3, %s828
          // Predicated region
          $region60: #{fwd.4} parent=58 // pred_check
            _
          $region61: #{fwd.4} parent=58 // pred_check_branch
            %831 = sbr.rel (0) target = $region63
          $region62: #{fwd.4} parent=58 // pred_region
            // Predicated region
            $region64: #{fwd.4} parent=62 // pred_check
              _
            $region65: #{fwd.4} parent=62 // pred_check_branch
              %833 = sbr.rel (0) target = $region67
            $region66: #{fwd.4} parent=62 // pred_region
              loop: start=0, step=1, limit=1
              $region68: #{fwd.4} parent=66 // loop_pre_header
                _
              $region69: #{fwd.4} parent=66 // loop_header
                %s835 = sphi 0, %s839
                %p836 = scmp.ge.s32.totalorder %s835, 1
                %s840 = sphi %s823, %s823
                %s841 = sphi %s829, %s829
              $region70: #{fwd.4} parent=66 // loop_header_branch
                %838 = sbr.rel (%p836) target = $region74
              $region71: #{fwd.4} parent=66 // loop_body
                %v842 = vld [vmem:[%s840] sm:$0xff]
                %843 = vst [vmem:[%s841] sm:$0xff] %v842
                %v844 = vld [vmem:[%s840 + $0x8] sm:$0xff]
                %845 = vst [vmem:[%s841 + $0x8] sm:$0xff] %v844
                %v846 = vld [vmem:[%s840 + $0x10] sm:$0xff]
                %847 = vst [vmem:[%s841 + $0x80] sm:$0xff] %v846
                %v848 = vld [vmem:[%s840 + $0x18] sm:$0xff]
                %849 = vst [vmem:[%s841 + $0x88] sm:$0xff] %v848
                %v850 = vld [vmem:[%s840 + $0x20] sm:$0xff]
                %851 = vst [vmem:[%s841 + $0x100] sm:$0xff] %v850
                %v852 = vld [vmem:[%s840 + $0x28] sm:$0xff]
                %853 = vst [vmem:[%s841 + $0x108] sm:$0xff] %v852
                %v854 = vld [vmem:[%s840 + $0x30] sm:$0xff]
                %855 = vst [vmem:[%s841 + $0x180] sm:$0xff] %v854
                %v856 = vld [vmem:[%s840 + $0x38] sm:$0xff]
                %857 = vst [vmem:[%s841 + $0x188] sm:$0xff] %v856
              $region72: #{fwd.4} parent=66 // loop_footer
                %s839 = sadd.s32 1, %s835
              $region73: #{fwd.4} parent=66 // loop_footer_branch
                %834 = sbr.rel target = $region69
              $region74: #{fwd.4} parent=66 // loop_exit
                _
            $region67: #{fwd.4} parent=62 // pred_fallthru
              _
            // Predicated region
            $region75: #{fwd.4} parent=62 // pred_check
              _
            $region76: #{fwd.4} parent=62 // pred_check_branch
              %859 = sbr.rel target = $region78
            $region77: #{fwd.4} parent=62 // pred_region
              _
            $region78: #{fwd.4} parent=62 // pred_fallthru
              _
          $region63: #{fwd.4} parent=58 // pred_fallthru
            _
          %860 = vnop
        $region59: #{fwd.4} parent=50 // pred_fallthru
          _
      $region51: #{fwd.4} parent=5 // pred_fallthru
        _
      %p861 = scmp.le.s32.totalorder 2, %s9
      // Predicated region
      $region79: #{fwd.4} parent=5 // pred_check
        %p862 = pneg %p861
      $region80: #{fwd.4} parent=5 // pred_check_branch
        %864 = sbr.rel (%p862) target = $region82
      $region81: #{fwd.4} parent=5 // pred_region
        %s865 = ssub.s32 %s9, 2
        // Predicated region
        $region83: #{fwd.4} parent=81 // pred_check
          %p866 = pneg %p106
        $region84: #{fwd.4} parent=81 // pred_check_branch
          %868 = sbr.rel (%p866) target = $region86
        $region85: #{fwd.4} parent=81 // pred_region
          %s869 = sand.u32 %s91, 1
          %s870 = sand.u32 %s91, 1
          %s871 = smul.addr %s870, 64
          %s872 = scalar_lea.vmem [#allocation3], %s871
        $region86: #{fwd.4} parent=81 // pred_fallthru
          _
      $region82: #{fwd.4} parent=5 // pred_fallthru
        _
    $region6: #{fwd.4} parent=1 // loop_footer
      %s13 = sadd.s32 1, %s9
    $region7: #{fwd.4} parent=1 // loop_footer_branch
      %8 = sbr.rel target = $region3
    $region8: #{fwd.4} parent=1 // loop_exit
      _

</llo_original>
